<compile_context>
chip_gen: v7x
topology: tpu7x:2x2x1
jax: 0.10.0
libtpu: 0.0.40
codegen_flags: <defaults>
</compile_context>

<pallas_src>
import math

import jax
import jax.numpy as jnp
import numpy as np
from jax.experimental import pallas as pl
from jax.experimental.pallas import tpu as pltpu


def _channel_constants(feature_dim: int) -> np.ndarray:
    """Per interleaved channel k in [0, 2F): (fx, fy, fz, phase_offset).

    Channel k maps to position_code[..., k // 2, k % 2]:
      k even -> cos lane, k odd -> sin lane; f = k // 2; axis(f) = f // d;
      freq(f) = exp(2 * ((f % d) // 2) * (-ln(1e4) / d))   with d = F // 3.
    cos(p) == sin(p + pi/2), so cos lanes get a +pi/2 phase offset and the
    kernel only ever evaluates sin.
    """
    d = feature_dim // 3
    k = np.arange(2 * feature_dim)
    f = k // 2
    axis = f // d
    j = f % d
    freq = np.exp((2.0 * (j // 2)) * (-math.log(10000.0) / d))
    fx = np.where(axis == 0, freq, 0.0)
    fy = np.where(axis == 1, freq, 0.0)
    fz = np.where(axis == 2, freq, 0.0)
    off = np.where(k % 2 == 0, np.pi / 2.0, 0.0)
    return np.stack([fx, fy, fz, off], axis=-1).astype(np.float32)  # (2F, 4)


def _rope3d_kernel_points_on_lanes(c_ref, xyz_ref, out_ref):
    """Lane-dense path. c_ref: (2F, 4); xyz_ref: (1, 3, TN); out_ref: (1, 2F, TN)."""
    xyz = xyz_ref[0]                  # (3, TN)
    x = xyz[0:1, :]                   # (1, TN), lane-dense rows
    y = xyz[1:2, :]
    z = xyz[2:3, :]
    fx = c_ref[:, 0:1]                # (2F, 1), per-sublane constants
    fy = c_ref[:, 1:2]
    fz = c_ref[:, 2:3]
    off = c_ref[:, 3:4]
    # Masked-MAC phase; cos channels carry +pi/2 so a single sin covers both.
    phase = x * fx + y * fy + z * fz + off      # (2F, TN)
    out_ref[0] = jnp.sin(phase)


def _rope3d_kernel_channels_on_lanes(c_ref, xyz_ref, out_ref):
    """Channel-minor path (2F % 128 == 0). c_ref: (4, 2F); xyz_ref: (1, TN, 3); out_ref: (1, TN, 2F)."""
    xyz = xyz_ref[0]                  # (TN, 3)
    x = xyz[:, 0:1]                   # (TN, 1)
    y = xyz[:, 1:2]
    z = xyz[:, 2:3]
    fx = c_ref[0:1, :]                # (1, 2F)
    fy = c_ref[1:2, :]
    fz = c_ref[2:3, :]
    off = c_ref[3:4, :]
    phase = x * fx + y * fy + z * fz + off      # (TN, 2F)
    out_ref[0] = jnp.sin(phase)


def _choose_tile_n(n: int, b: int, requested: int) -> int:
    """Pick a point-axis tile: multiple of 128 (or == N), >= 2 steps when B == 1."""
    if requested >= n:
        tile = n
    else:
        tile = max(128, (requested // 128) * 128)
        if tile >= n:
            tile = n
    # v7x megacore: with B == 1, split the 'parallel' point axis into >= 2
    # steps so both TensorCores get work (harmless on v5e/v6e: 1 TC).
    if b == 1 and tile == n and n >= 256:
        half = ((n + 1) // 2 + 127) // 128 * 128
        if half < n:
            tile = half
    return tile


def rotary_position_encoding_3d(xyz: jnp.ndarray, feature_dim: int,
                                *, tile_n: int = 1024) -> jnp.ndarray:
    """xyz: [B, N, 3] -> position_code [B, N, feature_dim, 2] float32."""
    B, N, c = xyz.shape
    assert c == 3, "XYZ must have a trailing dim of 3"
    d = feature_dim // 3
    assert feature_dim % 3 == 0 and d % 2 == 0, (
        "feature_dim must be divisible by 3 with an even per-axis channel count")

    two_f = 2 * feature_dim
    xyz = xyz.astype(jnp.float32)
    consts_np = _channel_constants(feature_dim)            # (2F, 4)
    tile = _choose_tile_n(N, B, tile_n)
    grid = (B, pl.cdiv(N, tile))

    cost = pl.CostEstimate(
        flops=7 * B * N * two_f,                           # 3 mul + 3 add + store prep
        transcendentals=B * N * two_f,                     # one sin per output element
        bytes_accessed=B * N * 3 * 4 + B * N * two_f * 4 + consts_np.size * 4,
    )
    params = pltpu.CompilerParams(
        dimension_semantics=("parallel", "parallel"))

    if two_f % 128 == 0:
        # Channels already fill the lane axis: keep [B, N, 2F]; the reshape to
        # [B, N, F, 2] is metadata-only (no extra HBM pass).
        out_flat = pl.pallas_call(
            _rope3d_kernel_channels_on_lanes,
            out_shape=jax.ShapeDtypeStruct((B, N, two_f), jnp.float32),
            grid=grid,
            in_specs=[pl.BlockSpec((4, two_f), lambda b, n: (0, 0)),
                      pl.BlockSpec((1, tile, 3), lambda b, n: (b, n, 0))],
            out_specs=pl.BlockSpec((1, tile, two_f), lambda b, n: (b, n, 0)),
            compiler_params=params,
            cost_estimate=cost,
        )(jnp.asarray(consts_np.T.copy()), xyz)
        return out_flat.reshape(B, N, feature_dim, 2)

    # Small / unaligned 2F: put the point axis on the 128-wide lane dimension
    # (full lane utilization, unmasked stores); channels live on sublanes.
    xyz_t = jnp.transpose(xyz, (0, 2, 1))                  # [B, 3, N] (tiny input)
    out_t = pl.pallas_call(
        _rope3d_kernel_points_on_lanes,
        out_shape=jax.ShapeDtypeStruct((B, two_f, N), jnp.float32),
        grid=grid,
        in_specs=[pl.BlockSpec((two_f, 4), lambda b, n: (0, 0)),
                  pl.BlockSpec((1, 3, tile), lambda b, n: (b, 0, n))],
        out_specs=pl.BlockSpec((1, two_f, tile), lambda b, n: (b, 0, n)),
        compiler_params=params,
        cost_estimate=cost,
    )(jnp.asarray(consts_np), xyz_t)

    # One mem-bound transpose back to the PyTorch layout [B, N, F, 2].
    # TODO(synk): position_code.detach() in the PyTorch forward is autograd-only
    # and has no effect in this inference-style JAX forward.
    return jnp.transpose(out_t, (0, 2, 1)).reshape(B, N, feature_dim, 2)


def rotary_position_encoding_3d_ref(xyz: jnp.ndarray, feature_dim: int) -> jnp.ndarray:
    """Plain-JAX reference mirroring the PyTorch forward exactly."""
    B, N, _ = xyz.shape
    x, y, z = xyz[..., 0:1], xyz[..., 1:2], xyz[..., 2:3]
    d = feature_dim // 3
    div_term = jnp.exp(
        jnp.arange(0, d, 2, dtype=jnp.float32) * (-math.log(10000.0) / d)
    ).reshape(1, 1, -1)

    def dup(f):  # stack([f, f], -1).view(B, N, -1)
        return jnp.stack([f, f], axis=-1).reshape(B, N, -1)

    sinx, cosx = dup(jnp.sin(x * div_term)), dup(jnp.cos(x * div_term))
    siny, cosy = dup(jnp.sin(y * div_term)), dup(jnp.cos(y * div_term))
    sinz, cosz = dup(jnp.sin(z * div_term)), dup(jnp.cos(z * div_term))
    sin_pos = jnp.concatenate([sinx, siny, sinz], axis=-1)
    cos_pos = jnp.concatenate([cosx, cosy, cosz], axis=-1)
    return jnp.stack([cos_pos, sin_pos], axis=-1)


if __name__ == "__main__":
    key = jax.random.PRNGKey(0)
    configs = [
        # (B, N, feature_dim): lane-dense path, multi-step grid
        (2, 2048, 12),
        # B == 1 + partial final block + v7x two-step split of the point axis
        (1, 640, 6),
        # 2F = 384 (multiple of 128): channel-minor path
        (2, 512, 192),
    ]
    for B, N, feature_dim in configs:
        key, sub = jax.random.split(key)
        xyz = jax.random.normal(sub, (B, N, 3), dtype=jnp.float32)

        out = rotary_position_encoding_3d(xyz, feature_dim)
        out = jax.block_until_ready(out)

        ref = rotary_position_encoding_3d_ref(xyz, feature_dim)
        assert out.shape == (B, N, feature_dim, 2), out.shape
        np.testing.assert_allclose(np.asarray(out), np.asarray(ref),
                                   rtol=1e-5, atol=1e-5)
    print("KERNEL_OK")
</pallas_src>

<mosaic_0001>
module attributes {stable_mosaic.version = 11 : i64} {
  func.func @_rope3d_kernel_points_on_lanes(%arg0: i32, %arg1: i32, %arg2: memref<24x4xf32, #tpu.memory_space<vmem>>, %arg3: memref<1x3x1024xf32, #tpu.memory_space<vmem>>, %arg4: memref<1x24x1024xf32, #tpu.memory_space<vmem>>) attributes {dimension_semantics = [#tpu.dimension_semantics<parallel>, #tpu.dimension_semantics<parallel>], iteration_bounds = array<i64: 2, 2>, scalar_prefetch = 0 : i64, scratch_operands = 0 : i64, tpu.core_type = #tpu.core_type<tc>, window_params = [{pipeline_mode = #tpu.pipeline_mode<synchronous>, transform_indices = @transform_0, window_bounds = array<i64: 24, 4>}, {transform_indices = @transform_1, window_bounds = array<i64: 1, 3, 1024>}, {transform_indices = @transform_2, window_bounds = array<i64: 1, 24, 1024>}]} {
    %c0 = arith.constant 0 : index
    %c0_0 = arith.constant 0 : index
    %c0_1 = arith.constant 0 : index
    %0 = vector.load %arg3[%c0, %c0_0, %c0_1] : memref<1x3x1024xf32, #tpu.memory_space<vmem>>, vector<1x3x1024xf32>
    %1 = vector.shape_cast %0 : vector<1x3x1024xf32> to vector<3x1024xf32>
    %2 = vector.extract_strided_slice %1 {offsets = [0, 0], sizes = [1, 1024], strides = [1, 1]} : vector<3x1024xf32> to vector<1x1024xf32>
    %3 = vector.extract_strided_slice %1 {offsets = [1, 0], sizes = [1, 1024], strides = [1, 1]} : vector<3x1024xf32> to vector<1x1024xf32>
    %4 = vector.extract_strided_slice %1 {offsets = [2, 0], sizes = [1, 1024], strides = [1, 1]} : vector<3x1024xf32> to vector<1x1024xf32>
    %c0_2 = arith.constant 0 : index
    %c0_3 = arith.constant 0 : index
    %5 = vector.load %arg2[%c0_2, %c0_3] : memref<24x4xf32, #tpu.memory_space<vmem>>, vector<24x1xf32>
    %c0_4 = arith.constant 0 : index
    %c1 = arith.constant 1 : index
    %6 = vector.load %arg2[%c0_4, %c1] : memref<24x4xf32, #tpu.memory_space<vmem>>, vector<24x1xf32>
    %c0_5 = arith.constant 0 : index
    %c2 = arith.constant 2 : index
    %7 = vector.load %arg2[%c0_5, %c2] : memref<24x4xf32, #tpu.memory_space<vmem>>, vector<24x1xf32>
    %c0_6 = arith.constant 0 : index
    %c3 = arith.constant 3 : index
    %8 = vector.load %arg2[%c0_6, %c3] : memref<24x4xf32, #tpu.memory_space<vmem>>, vector<24x1xf32>
    %9 = vector.broadcast %2 : vector<1x1024xf32> to vector<24x1024xf32>
    %10 = vector.broadcast %5 : vector<24x1xf32> to vector<24x1024xf32>
    %11 = arith.mulf %9, %10 : vector<24x1024xf32>
    %12 = vector.broadcast %3 : vector<1x1024xf32> to vector<24x1024xf32>
    %13 = vector.broadcast %6 : vector<24x1xf32> to vector<24x1024xf32>
    %14 = arith.mulf %12, %13 : vector<24x1024xf32>
    %15 = arith.addf %11, %14 : vector<24x1024xf32>
    %16 = vector.broadcast %4 : vector<1x1024xf32> to vector<24x1024xf32>
    %17 = vector.broadcast %7 : vector<24x1xf32> to vector<24x1024xf32>
    %18 = arith.mulf %16, %17 : vector<24x1024xf32>
    %19 = arith.addf %15, %18 : vector<24x1024xf32>
    %20 = vector.broadcast %8 : vector<24x1xf32> to vector<24x1024xf32>
    %21 = arith.addf %19, %20 : vector<24x1024xf32>
    %22 = math.sin %21 : vector<24x1024xf32>
    %c0_7 = arith.constant 0 : index
    %c0_8 = arith.constant 0 : index
    %c0_9 = arith.constant 0 : index
    %23 = vector.load %arg4[%c0_7, %c0_8, %c0_9] : memref<1x24x1024xf32, #tpu.memory_space<vmem>>, vector<1x24x1024xf32>
    %24 = vector.shape_cast %23 : vector<1x24x1024xf32> to vector<24x1024xf32>
    %25 = vector.shape_cast %22 : vector<24x1024xf32> to vector<1x24x1024xf32>
    tpu.vector_store %arg4[%c0_7, %c0_8, %c0_9], %25 {strides = array<i32>} : memref<1x24x1024xf32, #tpu.memory_space<vmem>>, vector<1x24x1024xf32>,
    return
  }
  func.func @transform_0(%arg0: i32, %arg1: i32) -> (i32, i32) {
    %c0_i32 = arith.constant 0 : i32
    %c0_i32_0 = arith.constant 0 : i32
    %c0_i32_1 = arith.constant 0 : i32
    return %c0_i32, %c0_i32_0 : i32, i32
  }
  func.func @transform_1(%arg0: i32, %arg1: i32) -> (i32, i32, i32) {
    %c0_i32 = arith.constant 0 : i32
    %c0_i32_0 = arith.constant 0 : i32
    return %arg0, %c0_i32, %arg1 : i32, i32, i32
  }
  func.func @transform_2(%arg0: i32, %arg1: i32) -> (i32, i32, i32) {
    %c0_i32 = arith.constant 0 : i32
    %c0_i32_0 = arith.constant 0 : i32
    return %arg0, %c0_i32, %arg1 : i32, i32, i32
  }
}

</mosaic_0001>

<llo_original>
// kernel: tpu_custom_call.1
$region0: #{tpu_custom_call.1}
  #allocation0 [shape = 'u32[]', space=smem, size = 0x4, offset = 0x4, fixed_abs, tag = 'smem constant byte address 0x4 - core index']
  #allocation1 [shape = 'u32[144,128]{1,0:T(1,128)}', space=vmem, size = 0x12000, scoped, tag = 'internal scratch']
  %s0 = inlined_call_operand.vmem [shape: f32[24,4], index: 0, kind: input, shape index: {}]
  %s1 = inlined_call_operand.vmem [shape: f32[2,3,2048], index: 1, kind: input, shape index: {}]
  %s2 = inlined_call_operand.hbm [shape: f32[2,24,2048], index: 2, kind: output, shape index: {}]
  %s3 = sld [smem:[#allocation0]]
  $region41: #{tpu_custom_call.1} parent=0
    _
  %s5 = ssub.s32 1, %s3
  %s6 = scalar_select 0, %s5, %s3
  $region1: #{tpu_custom_call.1} parent=0
    #allocation2 [shape = 'u8[196608]{0}', space=vmem, size = 0x30000, scoped, tag = 'output window, operand 0']
    #allocation3 [shape = 's32[2]{0}', space=sflag, size = 0x8, scoped, tag = 'scoped memory for tpu_custom_call.1']
    %7 = vsyncpa [#allocation3], 0
    %s8 = scalar_lea.sflag [#allocation3], 1
    %9 = vsyncpa %s8, 0
    loop: start=0, step=1, limit=6
    $region2: #{tpu_custom_call.1} parent=1 // loop_pre_header
      _
    $region3: #{tpu_custom_call.1} parent=1 // loop_header
      %s11 = sphi 0, %s15
      %p12 = scmp.ge.s32.totalorder %s11, 6
      %s18 = sphi 0, %s30
      %s19 = sphi 0, %s26
      %s20 = sphi 0, %s18
      %s21 = sphi 0, %s19
      %s22 = sphi 0, %s20
      %s23 = sphi 0, %s21
      %s31 = sphi 0, %s31
      %s33 = sphi 0, %s31
      %s34 = sphi 0, %s33
      %s48 = sphi 0, %s34
      %s56 = sphi 0, %s58
      %s59 = sphi 0, %s56
      %s60 = sphi 0, %s59
      %s76 = sphi 0, %s60
      %s84 = sphi 0, %s86
      %s87 = sphi 0, %s84
      %s88 = sphi 0, %s87
      %s104 = sphi 0, %s88
    $region4: #{tpu_custom_call.1} parent=1 // loop_header_branch
      %14 = sbr.rel (%p12) target = $region8
    $region5: #{tpu_custom_call.1} parent=1 // loop_body
      %s16 = ssub.s32 %s11, 1
      %s17 = ssub.s32 %s11, 2
      %s24 = sadd.s32 1, %s19
      %p25 = scmp.ge.s32.totalorder %s24, 2
      %s26 = scalar_select %p25, 0, %s24
      %s27 = sadd.s32 1, %s18
      %s28 = scalar_select %p25, %s27, %s18
      %p29 = scmp.ge.s32.totalorder %s28, 2
      %s30 = scalar_select %p29, 0, %s28
      %s32 = sadd.s32 %s31, 1
      %p35 = scmp.eq.s32.totalorder %s11, 3
      %p36 = scmp.ne.s32.totalorder %s31, %s33
      %p37 = scmp.eq.s32.totalorder %s11, 0
      %p38 = por %p36, %p37
      %p39 = scmp.ne.s32.totalorder %s31, %s33
      %p40 = scmp.eq.s32.totalorder %s16, 3
      %p41 = por %p39, %p40
      %p42 = scmp.ne.s32.totalorder %s33, %s34
      %p43 = scmp.eq.s32.totalorder %s16, 0
      %p44 = por %p42, %p43
      %p45 = scmp.ne.s32.totalorder %s33, %s34
      %p46 = scmp.eq.s32.totalorder %s17, 3
      %p47 = por %p45, %p46
      %p49 = scmp.ne.s32.totalorder %s34, %s48
      %p50 = scmp.eq.s32.totalorder %s17, 0
      %p51 = por %p49, %p50
      %s52 = ssub.s32 %s18, %s30
      %s53 = ssub.s32 %s19, %s26
      %s54 = sor.u32 %s52, %s53
      %p55 = scmp.eq.s32.totalorder %s54, 0
      %s57 = sadd.s32 %s56, 1
      %s58 = scalar_select %p55, %s56, %s57
      %p61 = pneg %p55
      %p62 = scmp.eq.s32.totalorder %s11, 3
      %p63 = por %p61, %p62
      %p64 = scmp.ne.s32.totalorder %s56, %s59
      %p65 = scmp.eq.s32.totalorder %s11, 0
      %p66 = por %p64, %p65
      %p67 = scmp.ne.s32.totalorder %s56, %s59
      %p68 = scmp.eq.s32.totalorder %s16, 3
      %p69 = por %p67, %p68
      %p70 = scmp.ne.s32.totalorder %s59, %s60
      %p71 = scmp.eq.s32.totalorder %s16, 0
      %p72 = por %p70, %p71
      %p73 = scmp.ne.s32.totalorder %s59, %s60
      %p74 = scmp.eq.s32.totalorder %s17, 3
      %p75 = por %p73, %p74
      %p77 = scmp.ne.s32.totalorder %s60, %s76
      %p78 = scmp.eq.s32.totalorder %s17, 0
      %p79 = por %p77, %p78
      %s80 = ssub.s32 %s18, %s30
      %s81 = ssub.s32 %s19, %s26
      %s82 = sor.u32 %s80, %s81
      %p83 = scmp.eq.s32.totalorder %s82, 0
      %s85 = sadd.s32 %s84, 1
      %s86 = scalar_select %p83, %s84, %s85
      %p89 = pneg %p83
      %p90 = scmp.eq.s32.totalorder %s11, 3
      %p91 = por %p89, %p90
      %p92 = scmp.ne.s32.totalorder %s84, %s87
      %p93 = scmp.eq.s32.totalorder %s11, 0
      %p94 = por %p92, %p93
      %p95 = scmp.ne.s32.totalorder %s84, %s87
      %p96 = scmp.eq.s32.totalorder %s16, 3
      %p97 = por %p95, %p96
      %p98 = scmp.ne.s32.totalorder %s87, %s88
      %p99 = scmp.eq.s32.totalorder %s16, 0
      %p100 = por %p98, %p99
      %p101 = scmp.ne.s32.totalorder %s87, %s88
      %p102 = scmp.eq.s32.totalorder %s17, 3
      %p103 = por %p101, %p102
      %p105 = scmp.ne.s32.totalorder %s88, %s104
      %p106 = scmp.eq.s32.totalorder %s17, 0
      %p107 = por %p105, %p106
      %p108 = scmp.le.s32.totalorder 1, %s11
      %p109 = scmp.lt.s32.totalorder %s11, 5
      %p110 = pnand %p108, %p109
      %p111 = pneg %p110
      // Predicated region
      $region9: #{tpu_custom_call.1} parent=5 // pred_check
        _
      $region10: #{tpu_custom_call.1} parent=5 // pred_check_branch
        %113 = sbr.rel (%p110) target = $region12
      $region11: #{tpu_custom_call.1} parent=5 // pred_region
        %s114 = ssub.s32 %s11, 1
        // Predicated region
        $region13: #{tpu_custom_call.1} parent=11 // pred_check
          %p115 = pneg %p44
        $region14: #{tpu_custom_call.1} parent=11 // pred_check_branch
          %117 = sbr.rel (%p115) target = $region16
        $region15: #{tpu_custom_call.1} parent=11 // pred_region
          _
        $region16: #{tpu_custom_call.1} parent=11 // pred_fallthru
          _
      $region12: #{tpu_custom_call.1} parent=5 // pred_fallthru
        _
      %p118 = scmp.lt.s32.totalorder %s11, 4
      // Predicated region
      $region17: #{tpu_custom_call.1} parent=5 // pred_check
        %p119 = pneg %p118
      $region18: #{tpu_custom_call.1} parent=5 // pred_check_branch
        %121 = sbr.rel (%p119) target = $region20
      $region19: #{tpu_custom_call.1} parent=5 // pred_region
        // Predicated region
        $region21: #{tpu_custom_call.1} parent=19 // pred_check
          %p122 = pneg %p66
        $region22: #{tpu_custom_call.1} parent=19 // pred_check_branch
          %124 = sbr.rel (%p122) target = $region24
        $region23: #{tpu_custom_call.1} parent=19 // pred_region
          %s125 = smul.u32 8, %s19
          %p126 = scmp.lt.s32.totalorder %s18, 1
          %s127 = scalar_select %p126, %s18, 1
          %p128 = scmp.lt.s32.totalorder %s125, 15
          %s129 = scalar_select %p128, %s125, 15
          %s130 = smul.addr %s127, 16
          %s131 = sadd.s32 %s129, %s130
          %s132 = smul.addr %s131, 4
          %s133 = scalar_lea.vmem %s1, %s132
          %s134 = smul.u32 8, %s19
        $region24: #{tpu_custom_call.1} parent=19 // pred_fallthru
          _
      $region20: #{tpu_custom_call.1} parent=5 // pred_fallthru
        _
      %p135 = scmp.le.s32.totalorder 1, %s11
      %p136 = scmp.lt.s32.totalorder %s11, 5
      %p137 = pnand %p135, %p136
      %p138 = pneg %p137
      // Predicated region
      $region25: #{tpu_custom_call.1} parent=5 // pred_check
        _
      $region26: #{tpu_custom_call.1} parent=5 // pred_check_branch
        %140 = sbr.rel (%p137) target = $region28
      $region27: #{tpu_custom_call.1} parent=5 // pred_region
        %s141 = ssub.s32 %s11, 1
        %p142 = pneg %p44
        %p143 = pneg %p41
        %s144 = smul.u32 8, %s21
        %p145 = scmp.lt.s32.totalorder %s20, 1
        %s146 = scalar_select %p145, %s20, 1
        %p147 = scmp.lt.s32.totalorder %s144, 15
        %s148 = scalar_select %p147, %s144, 15
        %s149 = smul.addr %s146, 16
        %s150 = sadd.s32 %s148, %s149
        %s151 = smul.addr %s150, 4
        %s152 = scalar_lea.vmem %s1, %s151
        %p153 = pneg %p72
        %p154 = pneg %p69
        %p155 = pneg %p100
        %p156 = pneg %p97
        %s157 = sand.u32 %s87, 1
        %s158 = scalar_lea.sflag [#allocation3], %s157
        %s159 = sand.u32 %s87, 1
        %s160 = smul.addr %s159, 192
        %s161 = scalar_lea.vmem [#allocation2], %s160
        %s162 = smul.u32 8, %s21
        %p163 = scmp.lt.s32.totalorder %s20, 1
        %s164 = scalar_select %p163, %s20, 1
        %p165 = scmp.lt.s32.totalorder %s162, 15
        %s166 = scalar_select %p165, %s162, 15
        %s167 = smul.addr %s164, 16
        %s168 = sadd.s32 %s166, %s167
        %s169 = smul.addr %s168, 4
        %s170 = scalar_lea.vmem %s1, %s169
        %s171 = smul.u32 8, %s21
        %s172 = smul.u32 8, %s21
        %v173 = vld [vmem:[%s170] sm:$0x77]
        %v174 = vld [vmem:[%s170 + $0x8] sm:$0x77]
        %v175 = vld [vmem:[%s170 + $0x10] sm:$0x77]
        %v176 = vld [vmem:[%s170 + $0x18] sm:$0x77]
        %v177 = vld [vmem:[%s0] sm:$0xff]
        %v178 = vld [vmem:[%s0 + $0x8] sm:$0xff]
        %v179 = vld [vmem:[%s0 + $0x10] sm:$0xff]
        %v184 = vlaneseq
        %v185 = vshrl.u32 %v184, 7
        %v186 = vsub.s32 0, %v185
        %v187 = vrot.slane %v173, %v186
        %v188 = vlaneseq
        %v189 = vshrl.u32 %v188, 7
        %v190 = vsub.s32 4, %v189
        %v191 = vrot.slane %v173, %v190
        %v192 = vlaneseq
        %v193 = vshrl.u32 %v192, 7
        %v194 = vsub.s32 0, %v193
        %v195 = vrot.slane %v174, %v194
        %v196 = vlaneseq
        %v197 = vshrl.u32 %v196, 7
        %v198 = vsub.s32 4, %v197
        %v199 = vrot.slane %v174, %v198
        %v200 = vlaneseq
        %v201 = vshrl.u32 %v200, 7
        %v202 = vsub.s32 0, %v201
        %v203 = vrot.slane %v175, %v202
        %v204 = vlaneseq
        %v205 = vshrl.u32 %v204, 7
        %v206 = vsub.s32 4, %v205
        %v207 = vrot.slane %v175, %v206
        %v208 = vlaneseq
        %v209 = vshrl.u32 %v208, 7
        %v210 = vsub.s32 0, %v209
        %v211 = vrot.slane %v176, %v210
        %v212 = vlaneseq
        %v213 = vshrl.u32 %v212, 7
        %v214 = vsub.s32 4, %v213
        %v215 = vrot.slane %v176, %v214
        %v224 = vlaneseq
        %v225 = vshrl.u32 %v224, 7
        %v226 = vsub.s32 0, %v225
        %v227 = vrot.slane %v187, %v226
        %v228 = vlaneseq
        %v229 = vshrl.u32 %v228, 7
        %v230 = vsub.s32 0, %v229
        %v231 = vrot.slane %v191, %v230
        %v232 = vlaneseq
        %v233 = vshrl.u32 %v232, 7
        %v234 = vsub.s32 0, %v233
        %v235 = vrot.slane %v195, %v234
        %v236 = vlaneseq
        %v237 = vshrl.u32 %v236, 7
        %v238 = vsub.s32 0, %v237
        %v239 = vrot.slane %v199, %v238
        %v240 = vlaneseq
        %v241 = vshrl.u32 %v240, 7
        %v242 = vsub.s32 0, %v241
        %v243 = vrot.slane %v203, %v242
        %v244 = vlaneseq
        %v245 = vshrl.u32 %v244, 7
        %v246 = vsub.s32 0, %v245
        %v247 = vrot.slane %v207, %v246
        %v248 = vlaneseq
        %v249 = vshrl.u32 %v248, 7
        %v250 = vsub.s32 0, %v249
        %v251 = vrot.slane %v211, %v250
        %v252 = vlaneseq
        %v253 = vshrl.u32 %v252, 7
        %v254 = vsub.s32 0, %v253
        %v255 = vrot.slane %v215, %v254
        %257 = vset.pattern.permute.xlu0 0
        %258 = vperm.xlu0 %257, %v177
        %v259 = vpop.permute.xlu0 %258
        %262 = vset.pattern.permute.xlu0 0
        %263 = vperm.xlu0 %262, %v178
        %v264 = vpop.permute.xlu0 %263
        %267 = vset.pattern.permute.xlu0 0
        %268 = vperm.xlu0 %267, %v179
        %v269 = vpop.permute.xlu0 %268
        %v271 = vmul.f32 %v227, %v259
        %v272 = vmul.f32 %v231, %v259
        %v273 = vmul.f32 %v235, %v259
        %v274 = vmul.f32 %v239, %v259
        %v275 = vmul.f32 %v243, %v259
        %v276 = vmul.f32 %v247, %v259
        %v277 = vmul.f32 %v251, %v259
        %v278 = vmul.f32 %v255, %v259
        %v279 = vmul.f32 %v227, %v264
        %v280 = vmul.f32 %v231, %v264
        %v281 = vmul.f32 %v235, %v264
        %v282 = vmul.f32 %v239, %v264
        %v283 = vmul.f32 %v243, %v264
        %v284 = vmul.f32 %v247, %v264
        %v285 = vmul.f32 %v251, %v264
        %v286 = vmul.f32 %v255, %v264
        %v287 = vmul.f32 %v227, %v269
        %v288 = vmul.f32 %v231, %v269
        %v289 = vmul.f32 %v235, %v269
        %v290 = vmul.f32 %v239, %v269
        %v291 = vmul.f32 %v243, %v269
        %v292 = vmul.f32 %v247, %v269
        %v293 = vmul.f32 %v251, %v269
        %v294 = vmul.f32 %v255, %v269
        %v295 = vlaneseq
        %v296 = vshrl.u32 %v295, 7
        %v297 = vsub.s32 1, %v296
        %v298 = vrot.slane %v173, %v297
        %v299 = vlaneseq
        %v300 = vshrl.u32 %v299, 7
        %v301 = vsub.s32 5, %v300
        %v302 = vrot.slane %v173, %v301
        %v303 = vlaneseq
        %v304 = vshrl.u32 %v303, 7
        %v305 = vsub.s32 1, %v304
        %v306 = vrot.slane %v174, %v305
        %v307 = vlaneseq
        %v308 = vshrl.u32 %v307, 7
        %v309 = vsub.s32 5, %v308
        %v310 = vrot.slane %v174, %v309
        %v311 = vlaneseq
        %v312 = vshrl.u32 %v311, 7
        %v313 = vsub.s32 1, %v312
        %v314 = vrot.slane %v175, %v313
        %v315 = vlaneseq
        %v316 = vshrl.u32 %v315, 7
        %v317 = vsub.s32 5, %v316
        %v318 = vrot.slane %v175, %v317
        %v319 = vlaneseq
        %v320 = vshrl.u32 %v319, 7
        %v321 = vsub.s32 1, %v320
        %v322 = vrot.slane %v176, %v321
        %v323 = vlaneseq
        %v324 = vshrl.u32 %v323, 7
        %v325 = vsub.s32 5, %v324
        %v326 = vrot.slane %v176, %v325
        %v335 = vlaneseq
        %v336 = vshrl.u32 %v335, 7
        %v337 = vsub.s32 1, %v336
        %v338 = vrot.slane %v298, %v337
        %v339 = vlaneseq
        %v340 = vshrl.u32 %v339, 7
        %v341 = vsub.s32 1, %v340
        %v342 = vrot.slane %v302, %v341
        %v343 = vlaneseq
        %v344 = vshrl.u32 %v343, 7
        %v345 = vsub.s32 1, %v344
        %v346 = vrot.slane %v306, %v345
        %v347 = vlaneseq
        %v348 = vshrl.u32 %v347, 7
        %v349 = vsub.s32 1, %v348
        %v350 = vrot.slane %v310, %v349
        %v351 = vlaneseq
        %v352 = vshrl.u32 %v351, 7
        %v353 = vsub.s32 1, %v352
        %v354 = vrot.slane %v314, %v353
        %v355 = vlaneseq
        %v356 = vshrl.u32 %v355, 7
        %v357 = vsub.s32 1, %v356
        %v358 = vrot.slane %v318, %v357
        %v359 = vlaneseq
        %v360 = vshrl.u32 %v359, 7
        %v361 = vsub.s32 1, %v360
        %v362 = vrot.slane %v322, %v361
        %v363 = vlaneseq
        %v364 = vshrl.u32 %v363, 7
        %v365 = vsub.s32 1, %v364
        %v366 = vrot.slane %v326, %v365
        %367 = vset.pattern.permute.xlu0 1
        %368 = vperm.xlu0 %367, %v177
        %v369 = vpop.permute.xlu0 %368
        %371 = vset.pattern.permute.xlu0 1
        %372 = vperm.xlu0 %371, %v178
        %v373 = vpop.permute.xlu0 %372
        %375 = vset.pattern.permute.xlu0 1
        %376 = vperm.xlu0 %375, %v179
        %v377 = vpop.permute.xlu0 %376
        %v379 = vmul.f32 %v338, %v369
        %v380 = vmul.f32 %v342, %v369
        %v381 = vmul.f32 %v346, %v369
        %v382 = vmul.f32 %v350, %v369
        %v383 = vmul.f32 %v354, %v369
        %v384 = vmul.f32 %v358, %v369
        %v385 = vmul.f32 %v362, %v369
        %v386 = vmul.f32 %v366, %v369
        %v387 = vmul.f32 %v338, %v373
        %v388 = vmul.f32 %v342, %v373
        %v389 = vmul.f32 %v346, %v373
        %v390 = vmul.f32 %v350, %v373
        %v391 = vmul.f32 %v354, %v373
        %v392 = vmul.f32 %v358, %v373
        %v393 = vmul.f32 %v362, %v373
        %v394 = vmul.f32 %v366, %v373
        %v395 = vmul.f32 %v338, %v377
        %v396 = vmul.f32 %v342, %v377
        %v397 = vmul.f32 %v346, %v377
        %v398 = vmul.f32 %v350, %v377
        %v399 = vmul.f32 %v354, %v377
        %v400 = vmul.f32 %v358, %v377
        %v401 = vmul.f32 %v362, %v377
        %v402 = vmul.f32 %v366, %v377
        %v403 = vadd.f32 %v271, %v379
        %v404 = vadd.f32 %v272, %v380
        %v405 = vadd.f32 %v273, %v381
        %v406 = vadd.f32 %v274, %v382
        %v407 = vadd.f32 %v275, %v383
        %v408 = vadd.f32 %v276, %v384
        %v409 = vadd.f32 %v277, %v385
        %v410 = vadd.f32 %v278, %v386
        %v411 = vadd.f32 %v279, %v387
        %v412 = vadd.f32 %v280, %v388
        %v413 = vadd.f32 %v281, %v389
        %v414 = vadd.f32 %v282, %v390
        %v415 = vadd.f32 %v283, %v391
        %v416 = vadd.f32 %v284, %v392
        %v417 = vadd.f32 %v285, %v393
        %v418 = vadd.f32 %v286, %v394
        %v419 = vadd.f32 %v287, %v395
        %v420 = vadd.f32 %v288, %v396
        %v421 = vadd.f32 %v289, %v397
        %v422 = vadd.f32 %v290, %v398
        %v423 = vadd.f32 %v291, %v399
        %v424 = vadd.f32 %v292, %v400
        %v425 = vadd.f32 %v293, %v401
        %v426 = vadd.f32 %v294, %v402
        %v427 = vlaneseq
        %v428 = vshrl.u32 %v427, 7
        %v429 = vsub.s32 2, %v428
        %v430 = vrot.slane %v173, %v429
        %v431 = vlaneseq
        %v432 = vshrl.u32 %v431, 7
        %v433 = vsub.s32 6, %v432
        %v434 = vrot.slane %v173, %v433
        %v435 = vlaneseq
        %v436 = vshrl.u32 %v435, 7
        %v437 = vsub.s32 2, %v436
        %v438 = vrot.slane %v174, %v437
        %v439 = vlaneseq
        %v440 = vshrl.u32 %v439, 7
        %v441 = vsub.s32 6, %v440
        %v442 = vrot.slane %v174, %v441
        %v443 = vlaneseq
        %v444 = vshrl.u32 %v443, 7
        %v445 = vsub.s32 2, %v444
        %v446 = vrot.slane %v175, %v445
        %v447 = vlaneseq
        %v448 = vshrl.u32 %v447, 7
        %v449 = vsub.s32 6, %v448
        %v450 = vrot.slane %v175, %v449
        %v451 = vlaneseq
        %v452 = vshrl.u32 %v451, 7
        %v453 = vsub.s32 2, %v452
        %v454 = vrot.slane %v176, %v453
        %v455 = vlaneseq
        %v456 = vshrl.u32 %v455, 7
        %v457 = vsub.s32 6, %v456
        %v458 = vrot.slane %v176, %v457
        %v467 = vlaneseq
        %v468 = vshrl.u32 %v467, 7
        %v469 = vsub.s32 2, %v468
        %v470 = vrot.slane %v430, %v469
        %v471 = vlaneseq
        %v472 = vshrl.u32 %v471, 7
        %v473 = vsub.s32 2, %v472
        %v474 = vrot.slane %v434, %v473
        %v475 = vlaneseq
        %v476 = vshrl.u32 %v475, 7
        %v477 = vsub.s32 2, %v476
        %v478 = vrot.slane %v438, %v477
        %v479 = vlaneseq
        %v480 = vshrl.u32 %v479, 7
        %v481 = vsub.s32 2, %v480
        %v482 = vrot.slane %v442, %v481
        %v483 = vlaneseq
        %v484 = vshrl.u32 %v483, 7
        %v485 = vsub.s32 2, %v484
        %v486 = vrot.slane %v446, %v485
        %v487 = vlaneseq
        %v488 = vshrl.u32 %v487, 7
        %v489 = vsub.s32 2, %v488
        %v490 = vrot.slane %v450, %v489
        %v491 = vlaneseq
        %v492 = vshrl.u32 %v491, 7
        %v493 = vsub.s32 2, %v492
        %v494 = vrot.slane %v454, %v493
        %v495 = vlaneseq
        %v496 = vshrl.u32 %v495, 7
        %v497 = vsub.s32 2, %v496
        %v498 = vrot.slane %v458, %v497
        %499 = vset.pattern.permute.xlu0 2
        %500 = vperm.xlu0 %499, %v177
        %v501 = vpop.permute.xlu0 %500
        %503 = vset.pattern.permute.xlu0 2
        %504 = vperm.xlu0 %503, %v178
        %v505 = vpop.permute.xlu0 %504
        %507 = vset.pattern.permute.xlu0 2
        %508 = vperm.xlu0 %507, %v179
        %v509 = vpop.permute.xlu0 %508
        %v511 = vmul.f32 %v470, %v501
        %v512 = vmul.f32 %v474, %v501
        %v513 = vmul.f32 %v478, %v501
        %v514 = vmul.f32 %v482, %v501
        %v515 = vmul.f32 %v486, %v501
        %v516 = vmul.f32 %v490, %v501
        %v517 = vmul.f32 %v494, %v501
        %v518 = vmul.f32 %v498, %v501
        %v519 = vmul.f32 %v470, %v505
        %v520 = vmul.f32 %v474, %v505
        %v521 = vmul.f32 %v478, %v505
        %v522 = vmul.f32 %v482, %v505
        %v523 = vmul.f32 %v486, %v505
        %v524 = vmul.f32 %v490, %v505
        %v525 = vmul.f32 %v494, %v505
        %v526 = vmul.f32 %v498, %v505
        %v527 = vmul.f32 %v470, %v509
        %v528 = vmul.f32 %v474, %v509
        %v529 = vmul.f32 %v478, %v509
        %v530 = vmul.f32 %v482, %v509
        %v531 = vmul.f32 %v486, %v509
        %v532 = vmul.f32 %v490, %v509
        %v533 = vmul.f32 %v494, %v509
        %v534 = vmul.f32 %v498, %v509
        %v535 = vadd.f32 %v403, %v511
        %v536 = vadd.f32 %v404, %v512
        %v537 = vadd.f32 %v405, %v513
        %v538 = vadd.f32 %v406, %v514
        %v539 = vadd.f32 %v407, %v515
        %v540 = vadd.f32 %v408, %v516
        %v541 = vadd.f32 %v409, %v517
        %v542 = vadd.f32 %v410, %v518
        %v543 = vadd.f32 %v411, %v519
        %v544 = vadd.f32 %v412, %v520
        %v545 = vadd.f32 %v413, %v521
        %v546 = vadd.f32 %v414, %v522
        %v547 = vadd.f32 %v415, %v523
        %v548 = vadd.f32 %v416, %v524
        %v549 = vadd.f32 %v417, %v525
        %v550 = vadd.f32 %v418, %v526
        %v551 = vadd.f32 %v419, %v527
        %v552 = vadd.f32 %v420, %v528
        %v553 = vadd.f32 %v421, %v529
        %v554 = vadd.f32 %v422, %v530
        %v555 = vadd.f32 %v423, %v531
        %v556 = vadd.f32 %v424, %v532
        %v557 = vadd.f32 %v425, %v533
        %v558 = vadd.f32 %v426, %v534
        %559 = vset.pattern.permute.xlu0 3
        %560 = vperm.xlu0 %559, %v177
        %v561 = vpop.permute.xlu0 %560
        %563 = vset.pattern.permute.xlu0 3
        %564 = vperm.xlu0 %563, %v178
        %v565 = vpop.permute.xlu0 %564
        %567 = vset.pattern.permute.xlu0 3
        %568 = vperm.xlu0 %567, %v179
        %v569 = vpop.permute.xlu0 %568
        %v571 = vadd.f32 %v535, %v561
        %v572 = vadd.f32 %v536, %v561
        %v573 = vadd.f32 %v537, %v561
        %v574 = vadd.f32 %v538, %v561
        %v575 = vadd.f32 %v539, %v561
        %v576 = vadd.f32 %v540, %v561
        %v577 = vadd.f32 %v541, %v561
        %v578 = vadd.f32 %v542, %v561
        %v579 = vadd.f32 %v543, %v565
        %v580 = vadd.f32 %v544, %v565
        %v581 = vadd.f32 %v545, %v565
        %v582 = vadd.f32 %v546, %v565
        %v583 = vadd.f32 %v547, %v565
        %v584 = vadd.f32 %v548, %v565
        %v585 = vadd.f32 %v549, %v565
        %v586 = vadd.f32 %v550, %v565
        %v587 = vadd.f32 %v551, %v569
        %v588 = vadd.f32 %v552, %v569
        %v589 = vadd.f32 %v553, %v569
        %v590 = vadd.f32 %v554, %v569
        %v591 = vadd.f32 %v555, %v569
        %v592 = vadd.f32 %v556, %v569
        %v593 = vadd.f32 %v557, %v569
        %v594 = vadd.f32 %v558, %v569
        %v595 = vand.u32 2147483647, %v571
        %vm596 = vcmp.le.f32.partialorder %v595, 0.7853982
        %vm597 = vcmp.lt.s32.totalorder %v571, 0
        %v598 = vand.u32 %v571, 2139095040
        %v599 = vshrl.u32 %v598, 23
        %v600 = vsub.s32 %v599, 127
        %v601 = vand.u32 2147483647, %v571
        %v602 = vand.u32 %v601, 8388607
        %v603 = vor.u32 %v602, 8388608
        %v604 = vsub.s32 0, %v603
        %v605 = vadd.s32 %v600, 1
        %vm606 = vcmp.gt.s32.totalorder %v605, 0
        %v607 = vsel %vm606, %v605, 0
        %v608 = vshrl.u32 %v607, 5
        %v609 = vand.u32 %v607, 31
        %v610 = vsub.s32 32, %v609
        %v611 = vshrl.u32 683565275, %v610
        %v612 = vshll.u32 683565275, %v609
        %v613 = vshrl.u32 2475754826, %v610
        %v614 = vor.u32 %v612, %v613
        %v615 = vshll.u32 2475754826, %v609
        %v616 = vshrl.u32 2131351028, %v610
        %v617 = vor.u32 %v615, %v616
        %v618 = vshll.u32 2131351028, %v609
        %v619 = vshrl.u32 2102212464, %v610
        %v620 = vor.u32 %v618, %v619
        %v621 = vshll.u32 2102212464, %v609
        %v622 = vshrl.u32 920167782, %v610
        %v623 = vor.u32 %v621, %v622
        %v624 = vshll.u32 920167782, %v609
        %v625 = vshrl.u32 1326507024, %v610
        %v626 = vor.u32 %v624, %v625
        %vm627 = vcmp.lt.s32.totalorder %v608, 1
        %vm628 = vcmp.lt.s32.totalorder %v608, 2
        %vm629 = vcmp.lt.s32.totalorder %v608, 3
        %vm630 = vcmp.lt.s32.totalorder %v608, 4
        %v631 = vsel %vm627, %v611, %v614
        %v632 = vsel %vm630, %v620, 2102212464
        %v633 = vsel %vm629, %v617, %v632
        %v634 = vsel %vm628, %v631, %v633
        %v635 = vsel %vm627, %v614, %v617
        %v636 = vsel %vm630, %v623, 920167782
        %v637 = vsel %vm629, %v620, %v636
        %v638 = vsel %vm628, %v635, %v637
        %v639 = vsel %vm627, %v617, %v620
        %v640 = vsel %vm630, %v626, 1326507024
        %v641 = vsel %vm629, %v623, %v640
        %v642 = vsel %vm628, %v639, %v641
        %v643 = vshll.u32 %v603, 8
        %v644 = vmul.u32.u64.compose %v643, %v642
        %v645 = vextract.low.u32 %v644
        %v646 = vextract.high.u32 %v644
        %v647 = vmul.u32.u64.compose %v643, %v638
        %v648 = vextract.low.u32 %v647
        %v649 = vextract.high.u32 %v647
        %v650 = vmul.u32 %v643, %v634
        %v651 = vadd.s32 %v646, %v648
        %vm652 = vc.u32 %v646, %v648
        %v653 = vadd.s32 %v649, 1
        %v654 = vsel %vm652, %v653, %v649
        %v655 = vadd.s32 %v650, %v654
        %v656 = vadd.s32 %v655, 536870912
        %v657 = vshrl.u32 %v656, 30
        %v658 = vshll.u32 %v657, 30
        %v659 = vsub.s32 %v655, %v658
        %vm660 = vcmp.lt.s32.totalorder %v659, 0
        %v661 = vsub.s32 0, %v659
        %v662 = vsel %vm660, %v661, %v659
        %v663 = vclz %v662
        %v664 = vsub.s32 %v663, 2
        %vm665 = vcmp.gt.s32.totalorder 0, %v664
        %v666 = vsel %vm665, 0, %v664
        %v667 = vsub.s32 32, %v666
        %v668 = vshll.u32 %v659, %v666
        %v669 = vshrl.u32 %v651, %v667
        %v670 = vor.u32 %v668, %v669
        %v671 = vsub.s32 4294967266, %v666
        %v672 = vadd.s32 %v671, 127
        %v673 = vshll.u32 %v672, 23
        %v674 = vor.u32 4788187, %v673
        %v675 = vand.u32 2147483647, %v674
        %v677 = vcvt.s32.f32 %v670
        %v678 = vmul.f32 %v677, %v675
        %v679 = vxor.u32 %v678, 2147483648
        %v680 = vsel %vm597, %v679, %v678
        %v681 = vsub.s32 4, %v657
        %v682 = vsel %vm597, %v681, %v657
        %v683 = vsel %vm596, %v571, %v680
        %v684 = vsel %vm596, 0, %v682
        %v685 = vcosq.f32.pop %v683
        %v686 = vsinq.f32.pop %v683
        %vm687 = vweird.f32 %v571
        %v688 = vadd.s32 %v684, 3
        %v689 = vand.u32 %v688, 3
        %vm690 = vcmp.lt.s32.totalorder %v689, 2
        %vm691 = vcmp.eq.s32.totalorder %v689, 0
        %v692 = vxor.u32 %v686, 2147483648
        %v693 = vsel %vm691, %v685, %v692
        %vm694 = vcmp.eq.s32.totalorder %v689, 2
        %v695 = vxor.u32 %v685, 2147483648
        %v696 = vsel %vm694, %v695, %v686
        %v697 = vsel %vm690, %v693, %v696
        %v698 = vsel %vm687, nan, %v697
        %v699 = vand.u32 2147483647, %v572
        %vm700 = vcmp.le.f32.partialorder %v699, 0.7853982
        %vm701 = vcmp.lt.s32.totalorder %v572, 0
        %v702 = vand.u32 %v572, 2139095040
        %v703 = vshrl.u32 %v702, 23
        %v704 = vsub.s32 %v703, 127
        %v705 = vand.u32 2147483647, %v572
        %v706 = vand.u32 %v705, 8388607
        %v707 = vor.u32 %v706, 8388608
        %v708 = vsub.s32 0, %v707
        %v709 = vadd.s32 %v704, 1
        %vm710 = vcmp.gt.s32.totalorder %v709, 0
        %v711 = vsel %vm710, %v709, 0
        %v712 = vshrl.u32 %v711, 5
        %v713 = vand.u32 %v711, 31
        %v714 = vsub.s32 32, %v713
        %v715 = vshrl.u32 683565275, %v714
        %v716 = vshll.u32 683565275, %v713
        %v717 = vshrl.u32 2475754826, %v714
        %v718 = vor.u32 %v716, %v717
        %v719 = vshll.u32 2475754826, %v713
        %v720 = vshrl.u32 2131351028, %v714
        %v721 = vor.u32 %v719, %v720
        %v722 = vshll.u32 2131351028, %v713
        %v723 = vshrl.u32 2102212464, %v714
        %v724 = vor.u32 %v722, %v723
        %v725 = vshll.u32 2102212464, %v713
        %v726 = vshrl.u32 920167782, %v714
        %v727 = vor.u32 %v725, %v726
        %v728 = vshll.u32 920167782, %v713
        %v729 = vshrl.u32 1326507024, %v714
        %v730 = vor.u32 %v728, %v729
        %vm731 = vcmp.lt.s32.totalorder %v712, 1
        %vm732 = vcmp.lt.s32.totalorder %v712, 2
        %vm733 = vcmp.lt.s32.totalorder %v712, 3
        %vm734 = vcmp.lt.s32.totalorder %v712, 4
        %v735 = vsel %vm731, %v715, %v718
        %v736 = vsel %vm734, %v724, 2102212464
        %v737 = vsel %vm733, %v721, %v736
        %v738 = vsel %vm732, %v735, %v737
        %v739 = vsel %vm731, %v718, %v721
        %v740 = vsel %vm734, %v727, 920167782
        %v741 = vsel %vm733, %v724, %v740
        %v742 = vsel %vm732, %v739, %v741
        %v743 = vsel %vm731, %v721, %v724
        %v744 = vsel %vm734, %v730, 1326507024
        %v745 = vsel %vm733, %v727, %v744
        %v746 = vsel %vm732, %v743, %v745
        %v747 = vshll.u32 %v707, 8
        %v748 = vmul.u32.u64.compose %v747, %v746
        %v749 = vextract.low.u32 %v748
        %v750 = vextract.high.u32 %v748
        %v751 = vmul.u32.u64.compose %v747, %v742
        %v752 = vextract.low.u32 %v751
        %v753 = vextract.high.u32 %v751
        %v754 = vmul.u32 %v747, %v738
        %v755 = vadd.s32 %v750, %v752
        %vm756 = vc.u32 %v750, %v752
        %v757 = vadd.s32 %v753, 1
        %v758 = vsel %vm756, %v757, %v753
        %v759 = vadd.s32 %v754, %v758
        %v760 = vadd.s32 %v759, 536870912
        %v761 = vshrl.u32 %v760, 30
        %v762 = vshll.u32 %v761, 30
        %v763 = vsub.s32 %v759, %v762
        %vm764 = vcmp.lt.s32.totalorder %v763, 0
        %v765 = vsub.s32 0, %v763
        %v766 = vsel %vm764, %v765, %v763
        %v767 = vclz %v766
        %v768 = vsub.s32 %v767, 2
        %vm769 = vcmp.gt.s32.totalorder 0, %v768
        %v770 = vsel %vm769, 0, %v768
        %v771 = vsub.s32 32, %v770
        %v772 = vshll.u32 %v763, %v770
        %v773 = vshrl.u32 %v755, %v771
        %v774 = vor.u32 %v772, %v773
        %v775 = vsub.s32 4294967266, %v770
        %v776 = vadd.s32 %v775, 127
        %v777 = vshll.u32 %v776, 23
        %v778 = vor.u32 4788187, %v777
        %v779 = vand.u32 2147483647, %v778
        %v781 = vcvt.s32.f32 %v774
        %v782 = vmul.f32 %v781, %v779
        %v783 = vxor.u32 %v782, 2147483648
        %v784 = vsel %vm701, %v783, %v782
        %v785 = vsub.s32 4, %v761
        %v786 = vsel %vm701, %v785, %v761
        %v787 = vsel %vm700, %v572, %v784
        %v788 = vsel %vm700, 0, %v786
        %v789 = vcosq.f32.pop %v787
        %v790 = vsinq.f32.pop %v787
        %vm791 = vweird.f32 %v572
        %v792 = vadd.s32 %v788, 3
        %v793 = vand.u32 %v792, 3
        %vm794 = vcmp.lt.s32.totalorder %v793, 2
        %vm795 = vcmp.eq.s32.totalorder %v793, 0
        %v796 = vxor.u32 %v790, 2147483648
        %v797 = vsel %vm795, %v789, %v796
        %vm798 = vcmp.eq.s32.totalorder %v793, 2
        %v799 = vxor.u32 %v789, 2147483648
        %v800 = vsel %vm798, %v799, %v790
        %v801 = vsel %vm794, %v797, %v800
        %v802 = vsel %vm791, nan, %v801
        %v803 = vand.u32 2147483647, %v573
        %vm804 = vcmp.le.f32.partialorder %v803, 0.7853982
        %vm805 = vcmp.lt.s32.totalorder %v573, 0
        %v806 = vand.u32 %v573, 2139095040
        %v807 = vshrl.u32 %v806, 23
        %v808 = vsub.s32 %v807, 127
        %v809 = vand.u32 2147483647, %v573
        %v810 = vand.u32 %v809, 8388607
        %v811 = vor.u32 %v810, 8388608
        %v812 = vsub.s32 0, %v811
        %v813 = vadd.s32 %v808, 1
        %vm814 = vcmp.gt.s32.totalorder %v813, 0
        %v815 = vsel %vm814, %v813, 0
        %v816 = vshrl.u32 %v815, 5
        %v817 = vand.u32 %v815, 31
        %v818 = vsub.s32 32, %v817
        %v819 = vshrl.u32 683565275, %v818
        %v820 = vshll.u32 683565275, %v817
        %v821 = vshrl.u32 2475754826, %v818
        %v822 = vor.u32 %v820, %v821
        %v823 = vshll.u32 2475754826, %v817
        %v824 = vshrl.u32 2131351028, %v818
        %v825 = vor.u32 %v823, %v824
        %v826 = vshll.u32 2131351028, %v817
        %v827 = vshrl.u32 2102212464, %v818
        %v828 = vor.u32 %v826, %v827
        %v829 = vshll.u32 2102212464, %v817
        %v830 = vshrl.u32 920167782, %v818
        %v831 = vor.u32 %v829, %v830
        %v832 = vshll.u32 920167782, %v817
        %v833 = vshrl.u32 1326507024, %v818
        %v834 = vor.u32 %v832, %v833
        %vm835 = vcmp.lt.s32.totalorder %v816, 1
        %vm836 = vcmp.lt.s32.totalorder %v816, 2
        %vm837 = vcmp.lt.s32.totalorder %v816, 3
        %vm838 = vcmp.lt.s32.totalorder %v816, 4
        %v839 = vsel %vm835, %v819, %v822
        %v840 = vsel %vm838, %v828, 2102212464
        %v841 = vsel %vm837, %v825, %v840
        %v842 = vsel %vm836, %v839, %v841
        %v843 = vsel %vm835, %v822, %v825
        %v844 = vsel %vm838, %v831, 920167782
        %v845 = vsel %vm837, %v828, %v844
        %v846 = vsel %vm836, %v843, %v845
        %v847 = vsel %vm835, %v825, %v828
        %v848 = vsel %vm838, %v834, 1326507024
        %v849 = vsel %vm837, %v831, %v848
        %v850 = vsel %vm836, %v847, %v849
        %v851 = vshll.u32 %v811, 8
        %v852 = vmul.u32.u64.compose %v851, %v850
        %v853 = vextract.low.u32 %v852
        %v854 = vextract.high.u32 %v852
        %v855 = vmul.u32.u64.compose %v851, %v846
        %v856 = vextract.low.u32 %v855
        %v857 = vextract.high.u32 %v855
        %v858 = vmul.u32 %v851, %v842
        %v859 = vadd.s32 %v854, %v856
        %vm860 = vc.u32 %v854, %v856
        %v861 = vadd.s32 %v857, 1
        %v862 = vsel %vm860, %v861, %v857
        %v863 = vadd.s32 %v858, %v862
        %v864 = vadd.s32 %v863, 536870912
        %v865 = vshrl.u32 %v864, 30
        %v866 = vshll.u32 %v865, 30
        %v867 = vsub.s32 %v863, %v866
        %vm868 = vcmp.lt.s32.totalorder %v867, 0
        %v869 = vsub.s32 0, %v867
        %v870 = vsel %vm868, %v869, %v867
        %v871 = vclz %v870
        %v872 = vsub.s32 %v871, 2
        %vm873 = vcmp.gt.s32.totalorder 0, %v872
        %v874 = vsel %vm873, 0, %v872
        %v875 = vsub.s32 32, %v874
        %v876 = vshll.u32 %v867, %v874
        %v877 = vshrl.u32 %v859, %v875
        %v878 = vor.u32 %v876, %v877
        %v879 = vsub.s32 4294967266, %v874
        %v880 = vadd.s32 %v879, 127
        %v881 = vshll.u32 %v880, 23
        %v882 = vor.u32 4788187, %v881
        %v883 = vand.u32 2147483647, %v882
        %v885 = vcvt.s32.f32 %v878
        %v886 = vmul.f32 %v885, %v883
        %v887 = vxor.u32 %v886, 2147483648
        %v888 = vsel %vm805, %v887, %v886
        %v889 = vsub.s32 4, %v865
        %v890 = vsel %vm805, %v889, %v865
        %v891 = vsel %vm804, %v573, %v888
        %v892 = vsel %vm804, 0, %v890
        %v893 = vcosq.f32.pop %v891
        %v894 = vsinq.f32.pop %v891
        %vm895 = vweird.f32 %v573
        %v896 = vadd.s32 %v892, 3
        %v897 = vand.u32 %v896, 3
        %vm898 = vcmp.lt.s32.totalorder %v897, 2
        %vm899 = vcmp.eq.s32.totalorder %v897, 0
        %v900 = vxor.u32 %v894, 2147483648
        %v901 = vsel %vm899, %v893, %v900
        %vm902 = vcmp.eq.s32.totalorder %v897, 2
        %v903 = vxor.u32 %v893, 2147483648
        %v904 = vsel %vm902, %v903, %v894
        %v905 = vsel %vm898, %v901, %v904
        %v906 = vsel %vm895, nan, %v905
        %v907 = vand.u32 2147483647, %v574
        %vm908 = vcmp.le.f32.partialorder %v907, 0.7853982
        %vm909 = vcmp.lt.s32.totalorder %v574, 0
        %v910 = vand.u32 %v574, 2139095040
        %v911 = vshrl.u32 %v910, 23
        %v912 = vsub.s32 %v911, 127
        %v913 = vand.u32 2147483647, %v574
        %v914 = vand.u32 %v913, 8388607
        %v915 = vor.u32 %v914, 8388608
        %v916 = vsub.s32 0, %v915
        %v917 = vadd.s32 %v912, 1
        %vm918 = vcmp.gt.s32.totalorder %v917, 0
        %v919 = vsel %vm918, %v917, 0
        %v920 = vshrl.u32 %v919, 5
        %v921 = vand.u32 %v919, 31
        %v922 = vsub.s32 32, %v921
        %v923 = vshrl.u32 683565275, %v922
        %v924 = vshll.u32 683565275, %v921
        %v925 = vshrl.u32 2475754826, %v922
        %v926 = vor.u32 %v924, %v925
        %v927 = vshll.u32 2475754826, %v921
        %v928 = vshrl.u32 2131351028, %v922
        %v929 = vor.u32 %v927, %v928
        %v930 = vshll.u32 2131351028, %v921
        %v931 = vshrl.u32 2102212464, %v922
        %v932 = vor.u32 %v930, %v931
        %v933 = vshll.u32 2102212464, %v921
        %v934 = vshrl.u32 920167782, %v922
        %v935 = vor.u32 %v933, %v934
        %v936 = vshll.u32 920167782, %v921
        %v937 = vshrl.u32 1326507024, %v922
        %v938 = vor.u32 %v936, %v937
        %vm939 = vcmp.lt.s32.totalorder %v920, 1
        %vm940 = vcmp.lt.s32.totalorder %v920, 2
        %vm941 = vcmp.lt.s32.totalorder %v920, 3
        %vm942 = vcmp.lt.s32.totalorder %v920, 4
        %v943 = vsel %vm939, %v923, %v926
        %v944 = vsel %vm942, %v932, 2102212464
        %v945 = vsel %vm941, %v929, %v944
        %v946 = vsel %vm940, %v943, %v945
        %v947 = vsel %vm939, %v926, %v929
        %v948 = vsel %vm942, %v935, 920167782
        %v949 = vsel %vm941, %v932, %v948
        %v950 = vsel %vm940, %v947, %v949
        %v951 = vsel %vm939, %v929, %v932
        %v952 = vsel %vm942, %v938, 1326507024
        %v953 = vsel %vm941, %v935, %v952
        %v954 = vsel %vm940, %v951, %v953
        %v955 = vshll.u32 %v915, 8
        %v956 = vmul.u32.u64.compose %v955, %v954
        %v957 = vextract.low.u32 %v956
        %v958 = vextract.high.u32 %v956
        %v959 = vmul.u32.u64.compose %v955, %v950
        %v960 = vextract.low.u32 %v959
        %v961 = vextract.high.u32 %v959
        %v962 = vmul.u32 %v955, %v946
        %v963 = vadd.s32 %v958, %v960
        %vm964 = vc.u32 %v958, %v960
        %v965 = vadd.s32 %v961, 1
        %v966 = vsel %vm964, %v965, %v961
        %v967 = vadd.s32 %v962, %v966
        %v968 = vadd.s32 %v967, 536870912
        %v969 = vshrl.u32 %v968, 30
        %v970 = vshll.u32 %v969, 30
        %v971 = vsub.s32 %v967, %v970
        %vm972 = vcmp.lt.s32.totalorder %v971, 0
        %v973 = vsub.s32 0, %v971
        %v974 = vsel %vm972, %v973, %v971
        %v975 = vclz %v974
        %v976 = vsub.s32 %v975, 2
        %vm977 = vcmp.gt.s32.totalorder 0, %v976
        %v978 = vsel %vm977, 0, %v976
        %v979 = vsub.s32 32, %v978
        %v980 = vshll.u32 %v971, %v978
        %v981 = vshrl.u32 %v963, %v979
        %v982 = vor.u32 %v980, %v981
        %v983 = vsub.s32 4294967266, %v978
        %v984 = vadd.s32 %v983, 127
        %v985 = vshll.u32 %v984, 23
        %v986 = vor.u32 4788187, %v985
        %v987 = vand.u32 2147483647, %v986
        %v989 = vcvt.s32.f32 %v982
        %v990 = vmul.f32 %v989, %v987
        %v991 = vxor.u32 %v990, 2147483648
        %v992 = vsel %vm909, %v991, %v990
        %v993 = vsub.s32 4, %v969
        %v994 = vsel %vm909, %v993, %v969
        %v995 = vsel %vm908, %v574, %v992
        %v996 = vsel %vm908, 0, %v994
        %v997 = vcosq.f32.pop %v995
        %v998 = vsinq.f32.pop %v995
        %vm999 = vweird.f32 %v574
        %v1000 = vadd.s32 %v996, 3
        %v1001 = vand.u32 %v1000, 3
        %vm1002 = vcmp.lt.s32.totalorder %v1001, 2
        %vm1003 = vcmp.eq.s32.totalorder %v1001, 0
        %v1004 = vxor.u32 %v998, 2147483648
        %v1005 = vsel %vm1003, %v997, %v1004
        %vm1006 = vcmp.eq.s32.totalorder %v1001, 2
        %v1007 = vxor.u32 %v997, 2147483648
        %v1008 = vsel %vm1006, %v1007, %v998
        %v1009 = vsel %vm1002, %v1005, %v1008
        %v1010 = vsel %vm999, nan, %v1009
        %v1011 = vand.u32 2147483647, %v575
        %vm1012 = vcmp.le.f32.partialorder %v1011, 0.7853982
        %vm1013 = vcmp.lt.s32.totalorder %v575, 0
        %v1014 = vand.u32 %v575, 2139095040
        %v1015 = vshrl.u32 %v1014, 23
        %v1016 = vsub.s32 %v1015, 127
        %v1017 = vand.u32 2147483647, %v575
        %v1018 = vand.u32 %v1017, 8388607
        %v1019 = vor.u32 %v1018, 8388608
        %v1020 = vsub.s32 0, %v1019
        %v1021 = vadd.s32 %v1016, 1
        %vm1022 = vcmp.gt.s32.totalorder %v1021, 0
        %v1023 = vsel %vm1022, %v1021, 0
        %v1024 = vshrl.u32 %v1023, 5
        %v1025 = vand.u32 %v1023, 31
        %v1026 = vsub.s32 32, %v1025
        %v1027 = vshrl.u32 683565275, %v1026
        %v1028 = vshll.u32 683565275, %v1025
        %v1029 = vshrl.u32 2475754826, %v1026
        %v1030 = vor.u32 %v1028, %v1029
        %v1031 = vshll.u32 2475754826, %v1025
        %v1032 = vshrl.u32 2131351028, %v1026
        %v1033 = vor.u32 %v1031, %v1032
        %v1034 = vshll.u32 2131351028, %v1025
        %v1035 = vshrl.u32 2102212464, %v1026
        %v1036 = vor.u32 %v1034, %v1035
        %v1037 = vshll.u32 2102212464, %v1025
        %v1038 = vshrl.u32 920167782, %v1026
        %v1039 = vor.u32 %v1037, %v1038
        %v1040 = vshll.u32 920167782, %v1025
        %v1041 = vshrl.u32 1326507024, %v1026
        %v1042 = vor.u32 %v1040, %v1041
        %vm1043 = vcmp.lt.s32.totalorder %v1024, 1
        %vm1044 = vcmp.lt.s32.totalorder %v1024, 2
        %vm1045 = vcmp.lt.s32.totalorder %v1024, 3
        %vm1046 = vcmp.lt.s32.totalorder %v1024, 4
        %v1047 = vsel %vm1043, %v1027, %v1030
        %v1048 = vsel %vm1046, %v1036, 2102212464
        %v1049 = vsel %vm1045, %v1033, %v1048
        %v1050 = vsel %vm1044, %v1047, %v1049
        %v1051 = vsel %vm1043, %v1030, %v1033
        %v1052 = vsel %vm1046, %v1039, 920167782
        %v1053 = vsel %vm1045, %v1036, %v1052
        %v1054 = vsel %vm1044, %v1051, %v1053
        %v1055 = vsel %vm1043, %v1033, %v1036
        %v1056 = vsel %vm1046, %v1042, 1326507024
        %v1057 = vsel %vm1045, %v1039, %v1056
        %v1058 = vsel %vm1044, %v1055, %v1057
        %v1059 = vshll.u32 %v1019, 8
        %v1060 = vmul.u32.u64.compose %v1059, %v1058
        %v1061 = vextract.low.u32 %v1060
        %v1062 = vextract.high.u32 %v1060
        %v1063 = vmul.u32.u64.compose %v1059, %v1054
        %v1064 = vextract.low.u32 %v1063
        %v1065 = vextract.high.u32 %v1063
        %v1066 = vmul.u32 %v1059, %v1050
        %v1067 = vadd.s32 %v1062, %v1064
        %vm1068 = vc.u32 %v1062, %v1064
        %v1069 = vadd.s32 %v1065, 1
        %v1070 = vsel %vm1068, %v1069, %v1065
        %v1071 = vadd.s32 %v1066, %v1070
        %v1072 = vadd.s32 %v1071, 536870912
        %v1073 = vshrl.u32 %v1072, 30
        %v1074 = vshll.u32 %v1073, 30
        %v1075 = vsub.s32 %v1071, %v1074
        %vm1076 = vcmp.lt.s32.totalorder %v1075, 0
        %v1077 = vsub.s32 0, %v1075
        %v1078 = vsel %vm1076, %v1077, %v1075
        %v1079 = vclz %v1078
        %v1080 = vsub.s32 %v1079, 2
        %vm1081 = vcmp.gt.s32.totalorder 0, %v1080
        %v1082 = vsel %vm1081, 0, %v1080
        %v1083 = vsub.s32 32, %v1082
        %v1084 = vshll.u32 %v1075, %v1082
        %v1085 = vshrl.u32 %v1067, %v1083
        %v1086 = vor.u32 %v1084, %v1085
        %v1087 = vsub.s32 4294967266, %v1082
        %v1088 = vadd.s32 %v1087, 127
        %v1089 = vshll.u32 %v1088, 23
        %v1090 = vor.u32 4788187, %v1089
        %v1091 = vand.u32 2147483647, %v1090
        %v1093 = vcvt.s32.f32 %v1086
        %v1094 = vmul.f32 %v1093, %v1091
        %v1095 = vxor.u32 %v1094, 2147483648
        %v1096 = vsel %vm1013, %v1095, %v1094
        %v1097 = vsub.s32 4, %v1073
        %v1098 = vsel %vm1013, %v1097, %v1073
        %v1099 = vsel %vm1012, %v575, %v1096
        %v1100 = vsel %vm1012, 0, %v1098
        %v1101 = vcosq.f32.pop %v1099
        %v1102 = vsinq.f32.pop %v1099
        %vm1103 = vweird.f32 %v575
        %v1104 = vadd.s32 %v1100, 3
        %v1105 = vand.u32 %v1104, 3
        %vm1106 = vcmp.lt.s32.totalorder %v1105, 2
        %vm1107 = vcmp.eq.s32.totalorder %v1105, 0
        %v1108 = vxor.u32 %v1102, 2147483648
        %v1109 = vsel %vm1107, %v1101, %v1108
        %vm1110 = vcmp.eq.s32.totalorder %v1105, 2
        %v1111 = vxor.u32 %v1101, 2147483648
        %v1112 = vsel %vm1110, %v1111, %v1102
        %v1113 = vsel %vm1106, %v1109, %v1112
        %v1114 = vsel %vm1103, nan, %v1113
        %v1115 = vand.u32 2147483647, %v576
        %vm1116 = vcmp.le.f32.partialorder %v1115, 0.7853982
        %vm1117 = vcmp.lt.s32.totalorder %v576, 0
        %v1118 = vand.u32 %v576, 2139095040
        %v1119 = vshrl.u32 %v1118, 23
        %v1120 = vsub.s32 %v1119, 127
        %v1121 = vand.u32 2147483647, %v576
        %v1122 = vand.u32 %v1121, 8388607
        %v1123 = vor.u32 %v1122, 8388608
        %v1124 = vsub.s32 0, %v1123
        %v1125 = vadd.s32 %v1120, 1
        %vm1126 = vcmp.gt.s32.totalorder %v1125, 0
        %v1127 = vsel %vm1126, %v1125, 0
        %v1128 = vshrl.u32 %v1127, 5
        %v1129 = vand.u32 %v1127, 31
        %v1130 = vsub.s32 32, %v1129
        %v1131 = vshrl.u32 683565275, %v1130
        %v1132 = vshll.u32 683565275, %v1129
        %v1133 = vshrl.u32 2475754826, %v1130
        %v1134 = vor.u32 %v1132, %v1133
        %v1135 = vshll.u32 2475754826, %v1129
        %v1136 = vshrl.u32 2131351028, %v1130
        %v1137 = vor.u32 %v1135, %v1136
        %v1138 = vshll.u32 2131351028, %v1129
        %v1139 = vshrl.u32 2102212464, %v1130
        %v1140 = vor.u32 %v1138, %v1139
        %v1141 = vshll.u32 2102212464, %v1129
        %v1142 = vshrl.u32 920167782, %v1130
        %v1143 = vor.u32 %v1141, %v1142
        %v1144 = vshll.u32 920167782, %v1129
        %v1145 = vshrl.u32 1326507024, %v1130
        %v1146 = vor.u32 %v1144, %v1145
        %vm1147 = vcmp.lt.s32.totalorder %v1128, 1
        %vm1148 = vcmp.lt.s32.totalorder %v1128, 2
        %vm1149 = vcmp.lt.s32.totalorder %v1128, 3
        %vm1150 = vcmp.lt.s32.totalorder %v1128, 4
        %v1151 = vsel %vm1147, %v1131, %v1134
        %v1152 = vsel %vm1150, %v1140, 2102212464
        %v1153 = vsel %vm1149, %v1137, %v1152
        %v1154 = vsel %vm1148, %v1151, %v1153
        %v1155 = vsel %vm1147, %v1134, %v1137
        %v1156 = vsel %vm1150, %v1143, 920167782
        %v1157 = vsel %vm1149, %v1140, %v1156
        %v1158 = vsel %vm1148, %v1155, %v1157
        %v1159 = vsel %vm1147, %v1137, %v1140
        %v1160 = vsel %vm1150, %v1146, 1326507024
        %v1161 = vsel %vm1149, %v1143, %v1160
        %v1162 = vsel %vm1148, %v1159, %v1161
        %v1163 = vshll.u32 %v1123, 8
        %v1164 = vmul.u32.u64.compose %v1163, %v1162
        %v1165 = vextract.low.u32 %v1164
        %v1166 = vextract.high.u32 %v1164
        %v1167 = vmul.u32.u64.compose %v1163, %v1158
        %v1168 = vextract.low.u32 %v1167
        %v1169 = vextract.high.u32 %v1167
        %v1170 = vmul.u32 %v1163, %v1154
        %v1171 = vadd.s32 %v1166, %v1168
        %vm1172 = vc.u32 %v1166, %v1168
        %v1173 = vadd.s32 %v1169, 1
        %v1174 = vsel %vm1172, %v1173, %v1169
        %v1175 = vadd.s32 %v1170, %v1174
        %v1176 = vadd.s32 %v1175, 536870912
        %v1177 = vshrl.u32 %v1176, 30
        %v1178 = vshll.u32 %v1177, 30
        %v1179 = vsub.s32 %v1175, %v1178
        %vm1180 = vcmp.lt.s32.totalorder %v1179, 0
        %v1181 = vsub.s32 0, %v1179
        %v1182 = vsel %vm1180, %v1181, %v1179
        %v1183 = vclz %v1182
        %v1184 = vsub.s32 %v1183, 2
        %vm1185 = vcmp.gt.s32.totalorder 0, %v1184
        %v1186 = vsel %vm1185, 0, %v1184
        %v1187 = vsub.s32 32, %v1186
        %v1188 = vshll.u32 %v1179, %v1186
        %v1189 = vshrl.u32 %v1171, %v1187
        %v1190 = vor.u32 %v1188, %v1189
        %v1191 = vsub.s32 4294967266, %v1186
        %v1192 = vadd.s32 %v1191, 127
        %v1193 = vshll.u32 %v1192, 23
        %v1194 = vor.u32 4788187, %v1193
        %v1195 = vand.u32 2147483647, %v1194
        %v1197 = vcvt.s32.f32 %v1190
        %v1198 = vmul.f32 %v1197, %v1195
        %v1199 = vxor.u32 %v1198, 2147483648
        %v1200 = vsel %vm1117, %v1199, %v1198
        %v1201 = vsub.s32 4, %v1177
        %v1202 = vsel %vm1117, %v1201, %v1177
        %v1203 = vsel %vm1116, %v576, %v1200
        %v1204 = vsel %vm1116, 0, %v1202
        %v1205 = vcosq.f32.pop %v1203
        %v1206 = vsinq.f32.pop %v1203
        %vm1207 = vweird.f32 %v576
        %v1208 = vadd.s32 %v1204, 3
        %v1209 = vand.u32 %v1208, 3
        %vm1210 = vcmp.lt.s32.totalorder %v1209, 2
        %vm1211 = vcmp.eq.s32.totalorder %v1209, 0
        %v1212 = vxor.u32 %v1206, 2147483648
        %v1213 = vsel %vm1211, %v1205, %v1212
        %vm1214 = vcmp.eq.s32.totalorder %v1209, 2
        %v1215 = vxor.u32 %v1205, 2147483648
        %v1216 = vsel %vm1214, %v1215, %v1206
        %v1217 = vsel %vm1210, %v1213, %v1216
        %v1218 = vsel %vm1207, nan, %v1217
        %v1219 = vand.u32 2147483647, %v577
        %vm1220 = vcmp.le.f32.partialorder %v1219, 0.7853982
        %vm1221 = vcmp.lt.s32.totalorder %v577, 0
        %v1222 = vand.u32 %v577, 2139095040
        %v1223 = vshrl.u32 %v1222, 23
        %v1224 = vsub.s32 %v1223, 127
        %v1225 = vand.u32 2147483647, %v577
        %v1226 = vand.u32 %v1225, 8388607
        %v1227 = vor.u32 %v1226, 8388608
        %v1228 = vsub.s32 0, %v1227
        %v1229 = vadd.s32 %v1224, 1
        %vm1230 = vcmp.gt.s32.totalorder %v1229, 0
        %v1231 = vsel %vm1230, %v1229, 0
        %v1232 = vshrl.u32 %v1231, 5
        %v1233 = vand.u32 %v1231, 31
        %v1234 = vsub.s32 32, %v1233
        %v1235 = vshrl.u32 683565275, %v1234
        %v1236 = vshll.u32 683565275, %v1233
        %v1237 = vshrl.u32 2475754826, %v1234
        %v1238 = vor.u32 %v1236, %v1237
        %v1239 = vshll.u32 2475754826, %v1233
        %v1240 = vshrl.u32 2131351028, %v1234
        %v1241 = vor.u32 %v1239, %v1240
        %v1242 = vshll.u32 2131351028, %v1233
        %v1243 = vshrl.u32 2102212464, %v1234
        %v1244 = vor.u32 %v1242, %v1243
        %v1245 = vshll.u32 2102212464, %v1233
        %v1246 = vshrl.u32 920167782, %v1234
        %v1247 = vor.u32 %v1245, %v1246
        %v1248 = vshll.u32 920167782, %v1233
        %v1249 = vshrl.u32 1326507024, %v1234
        %v1250 = vor.u32 %v1248, %v1249
        %vm1251 = vcmp.lt.s32.totalorder %v1232, 1
        %vm1252 = vcmp.lt.s32.totalorder %v1232, 2
        %vm1253 = vcmp.lt.s32.totalorder %v1232, 3
        %vm1254 = vcmp.lt.s32.totalorder %v1232, 4
        %v1255 = vsel %vm1251, %v1235, %v1238
        %v1256 = vsel %vm1254, %v1244, 2102212464
        %v1257 = vsel %vm1253, %v1241, %v1256
        %v1258 = vsel %vm1252, %v1255, %v1257
        %v1259 = vsel %vm1251, %v1238, %v1241
        %v1260 = vsel %vm1254, %v1247, 920167782
        %v1261 = vsel %vm1253, %v1244, %v1260
        %v1262 = vsel %vm1252, %v1259, %v1261
        %v1263 = vsel %vm1251, %v1241, %v1244
        %v1264 = vsel %vm1254, %v1250, 1326507024
        %v1265 = vsel %vm1253, %v1247, %v1264
        %v1266 = vsel %vm1252, %v1263, %v1265
        %v1267 = vshll.u32 %v1227, 8
        %v1268 = vmul.u32.u64.compose %v1267, %v1266
        %v1269 = vextract.low.u32 %v1268
        %v1270 = vextract.high.u32 %v1268
        %v1271 = vmul.u32.u64.compose %v1267, %v1262
        %v1272 = vextract.low.u32 %v1271
        %v1273 = vextract.high.u32 %v1271
        %v1274 = vmul.u32 %v1267, %v1258
        %v1275 = vadd.s32 %v1270, %v1272
        %vm1276 = vc.u32 %v1270, %v1272
        %v1277 = vadd.s32 %v1273, 1
        %v1278 = vsel %vm1276, %v1277, %v1273
        %v1279 = vadd.s32 %v1274, %v1278
        %v1280 = vadd.s32 %v1279, 536870912
        %v1281 = vshrl.u32 %v1280, 30
        %v1282 = vshll.u32 %v1281, 30
        %v1283 = vsub.s32 %v1279, %v1282
        %vm1284 = vcmp.lt.s32.totalorder %v1283, 0
        %v1285 = vsub.s32 0, %v1283
        %v1286 = vsel %vm1284, %v1285, %v1283
        %v1287 = vclz %v1286
        %v1288 = vsub.s32 %v1287, 2
        %vm1289 = vcmp.gt.s32.totalorder 0, %v1288
        %v1290 = vsel %vm1289, 0, %v1288
        %v1291 = vsub.s32 32, %v1290
        %v1292 = vshll.u32 %v1283, %v1290
        %v1293 = vshrl.u32 %v1275, %v1291
        %v1294 = vor.u32 %v1292, %v1293
        %v1295 = vsub.s32 4294967266, %v1290
        %v1296 = vadd.s32 %v1295, 127
        %v1297 = vshll.u32 %v1296, 23
        %v1298 = vor.u32 4788187, %v1297
        %v1299 = vand.u32 2147483647, %v1298
        %v1301 = vcvt.s32.f32 %v1294
        %v1302 = vmul.f32 %v1301, %v1299
        %v1303 = vxor.u32 %v1302, 2147483648
        %v1304 = vsel %vm1221, %v1303, %v1302
        %v1305 = vsub.s32 4, %v1281
        %v1306 = vsel %vm1221, %v1305, %v1281
        %v1307 = vsel %vm1220, %v577, %v1304
        %v1308 = vsel %vm1220, 0, %v1306
        %v1309 = vcosq.f32.pop %v1307
        %v1310 = vsinq.f32.pop %v1307
        %vm1311 = vweird.f32 %v577
        %v1312 = vadd.s32 %v1308, 3
        %v1313 = vand.u32 %v1312, 3
        %vm1314 = vcmp.lt.s32.totalorder %v1313, 2
        %vm1315 = vcmp.eq.s32.totalorder %v1313, 0
        %v1316 = vxor.u32 %v1310, 2147483648
        %v1317 = vsel %vm1315, %v1309, %v1316
        %vm1318 = vcmp.eq.s32.totalorder %v1313, 2
        %v1319 = vxor.u32 %v1309, 2147483648
        %v1320 = vsel %vm1318, %v1319, %v1310
        %v1321 = vsel %vm1314, %v1317, %v1320
        %v1322 = vsel %vm1311, nan, %v1321
        %v1323 = vand.u32 2147483647, %v578
        %vm1324 = vcmp.le.f32.partialorder %v1323, 0.7853982
        %vm1325 = vcmp.lt.s32.totalorder %v578, 0
        %v1326 = vand.u32 %v578, 2139095040
        %v1327 = vshrl.u32 %v1326, 23
        %v1328 = vsub.s32 %v1327, 127
        %v1329 = vand.u32 2147483647, %v578
        %v1330 = vand.u32 %v1329, 8388607
        %v1331 = vor.u32 %v1330, 8388608
        %v1332 = vsub.s32 0, %v1331
        %v1333 = vadd.s32 %v1328, 1
        %vm1334 = vcmp.gt.s32.totalorder %v1333, 0
        %v1335 = vsel %vm1334, %v1333, 0
        %v1336 = vshrl.u32 %v1335, 5
        %v1337 = vand.u32 %v1335, 31
        %v1338 = vsub.s32 32, %v1337
        %v1339 = vshrl.u32 683565275, %v1338
        %v1340 = vshll.u32 683565275, %v1337
        %v1341 = vshrl.u32 2475754826, %v1338
        %v1342 = vor.u32 %v1340, %v1341
        %v1343 = vshll.u32 2475754826, %v1337
        %v1344 = vshrl.u32 2131351028, %v1338
        %v1345 = vor.u32 %v1343, %v1344
        %v1346 = vshll.u32 2131351028, %v1337
        %v1347 = vshrl.u32 2102212464, %v1338
        %v1348 = vor.u32 %v1346, %v1347
        %v1349 = vshll.u32 2102212464, %v1337
        %v1350 = vshrl.u32 920167782, %v1338
        %v1351 = vor.u32 %v1349, %v1350
        %v1352 = vshll.u32 920167782, %v1337
        %v1353 = vshrl.u32 1326507024, %v1338
        %v1354 = vor.u32 %v1352, %v1353
        %vm1355 = vcmp.lt.s32.totalorder %v1336, 1
        %vm1356 = vcmp.lt.s32.totalorder %v1336, 2
        %vm1357 = vcmp.lt.s32.totalorder %v1336, 3
        %vm1358 = vcmp.lt.s32.totalorder %v1336, 4
        %v1359 = vsel %vm1355, %v1339, %v1342
        %v1360 = vsel %vm1358, %v1348, 2102212464
        %v1361 = vsel %vm1357, %v1345, %v1360
        %v1362 = vsel %vm1356, %v1359, %v1361
        %v1363 = vsel %vm1355, %v1342, %v1345
        %v1364 = vsel %vm1358, %v1351, 920167782
        %v1365 = vsel %vm1357, %v1348, %v1364
        %v1366 = vsel %vm1356, %v1363, %v1365
        %v1367 = vsel %vm1355, %v1345, %v1348
        %v1368 = vsel %vm1358, %v1354, 1326507024
        %v1369 = vsel %vm1357, %v1351, %v1368
        %v1370 = vsel %vm1356, %v1367, %v1369
        %v1371 = vshll.u32 %v1331, 8
        %v1372 = vmul.u32.u64.compose %v1371, %v1370
        %v1373 = vextract.low.u32 %v1372
        %v1374 = vextract.high.u32 %v1372
        %v1375 = vmul.u32.u64.compose %v1371, %v1366
        %v1376 = vextract.low.u32 %v1375
        %v1377 = vextract.high.u32 %v1375
        %v1378 = vmul.u32 %v1371, %v1362
        %v1379 = vadd.s32 %v1374, %v1376
        %vm1380 = vc.u32 %v1374, %v1376
        %v1381 = vadd.s32 %v1377, 1
        %v1382 = vsel %vm1380, %v1381, %v1377
        %v1383 = vadd.s32 %v1378, %v1382
        %v1384 = vadd.s32 %v1383, 536870912
        %v1385 = vshrl.u32 %v1384, 30
        %v1386 = vshll.u32 %v1385, 30
        %v1387 = vsub.s32 %v1383, %v1386
        %vm1388 = vcmp.lt.s32.totalorder %v1387, 0
        %v1389 = vsub.s32 0, %v1387
        %v1390 = vsel %vm1388, %v1389, %v1387
        %v1391 = vclz %v1390
        %v1392 = vsub.s32 %v1391, 2
        %vm1393 = vcmp.gt.s32.totalorder 0, %v1392
        %v1394 = vsel %vm1393, 0, %v1392
        %v1395 = vsub.s32 32, %v1394
        %v1396 = vshll.u32 %v1387, %v1394
        %v1397 = vshrl.u32 %v1379, %v1395
        %v1398 = vor.u32 %v1396, %v1397
        %v1399 = vsub.s32 4294967266, %v1394
        %v1400 = vadd.s32 %v1399, 127
        %v1401 = vshll.u32 %v1400, 23
        %v1402 = vor.u32 4788187, %v1401
        %v1403 = vand.u32 2147483647, %v1402
        %v1405 = vcvt.s32.f32 %v1398
        %v1406 = vmul.f32 %v1405, %v1403
        %v1407 = vxor.u32 %v1406, 2147483648
        %v1408 = vsel %vm1325, %v1407, %v1406
        %v1409 = vsub.s32 4, %v1385
        %v1410 = vsel %vm1325, %v1409, %v1385
        %v1411 = vsel %vm1324, %v578, %v1408
        %v1412 = vsel %vm1324, 0, %v1410
        %v1413 = vcosq.f32.pop %v1411
        %v1414 = vsinq.f32.pop %v1411
        %vm1415 = vweird.f32 %v578
        %v1416 = vadd.s32 %v1412, 3
        %v1417 = vand.u32 %v1416, 3
        %vm1418 = vcmp.lt.s32.totalorder %v1417, 2
        %vm1419 = vcmp.eq.s32.totalorder %v1417, 0
        %v1420 = vxor.u32 %v1414, 2147483648
        %v1421 = vsel %vm1419, %v1413, %v1420
        %vm1422 = vcmp.eq.s32.totalorder %v1417, 2
        %v1423 = vxor.u32 %v1413, 2147483648
        %v1424 = vsel %vm1422, %v1423, %v1414
        %v1425 = vsel %vm1418, %v1421, %v1424
        %v1426 = vsel %vm1415, nan, %v1425
        %v1427 = vand.u32 2147483647, %v579
        %vm1428 = vcmp.le.f32.partialorder %v1427, 0.7853982
        %vm1429 = vcmp.lt.s32.totalorder %v579, 0
        %v1430 = vand.u32 %v579, 2139095040
        %v1431 = vshrl.u32 %v1430, 23
        %v1432 = vsub.s32 %v1431, 127
        %v1433 = vand.u32 2147483647, %v579
        %v1434 = vand.u32 %v1433, 8388607
        %v1435 = vor.u32 %v1434, 8388608
        %v1436 = vsub.s32 0, %v1435
        %v1437 = vadd.s32 %v1432, 1
        %vm1438 = vcmp.gt.s32.totalorder %v1437, 0
        %v1439 = vsel %vm1438, %v1437, 0
        %v1440 = vshrl.u32 %v1439, 5
        %v1441 = vand.u32 %v1439, 31
        %v1442 = vsub.s32 32, %v1441
        %v1443 = vshrl.u32 683565275, %v1442
        %v1444 = vshll.u32 683565275, %v1441
        %v1445 = vshrl.u32 2475754826, %v1442
        %v1446 = vor.u32 %v1444, %v1445
        %v1447 = vshll.u32 2475754826, %v1441
        %v1448 = vshrl.u32 2131351028, %v1442
        %v1449 = vor.u32 %v1447, %v1448
        %v1450 = vshll.u32 2131351028, %v1441
        %v1451 = vshrl.u32 2102212464, %v1442
        %v1452 = vor.u32 %v1450, %v1451
        %v1453 = vshll.u32 2102212464, %v1441
        %v1454 = vshrl.u32 920167782, %v1442
        %v1455 = vor.u32 %v1453, %v1454
        %v1456 = vshll.u32 920167782, %v1441
        %v1457 = vshrl.u32 1326507024, %v1442
        %v1458 = vor.u32 %v1456, %v1457
        %vm1459 = vcmp.lt.s32.totalorder %v1440, 1
        %vm1460 = vcmp.lt.s32.totalorder %v1440, 2
        %vm1461 = vcmp.lt.s32.totalorder %v1440, 3
        %vm1462 = vcmp.lt.s32.totalorder %v1440, 4
        %v1463 = vsel %vm1459, %v1443, %v1446
        %v1464 = vsel %vm1462, %v1452, 2102212464
        %v1465 = vsel %vm1461, %v1449, %v1464
        %v1466 = vsel %vm1460, %v1463, %v1465
        %v1467 = vsel %vm1459, %v1446, %v1449
        %v1468 = vsel %vm1462, %v1455, 920167782
        %v1469 = vsel %vm1461, %v1452, %v1468
        %v1470 = vsel %vm1460, %v1467, %v1469
        %v1471 = vsel %vm1459, %v1449, %v1452
        %v1472 = vsel %vm1462, %v1458, 1326507024
        %v1473 = vsel %vm1461, %v1455, %v1472
        %v1474 = vsel %vm1460, %v1471, %v1473
        %v1475 = vshll.u32 %v1435, 8
        %v1476 = vmul.u32.u64.compose %v1475, %v1474
        %v1477 = vextract.low.u32 %v1476
        %v1478 = vextract.high.u32 %v1476
        %v1479 = vmul.u32.u64.compose %v1475, %v1470
        %v1480 = vextract.low.u32 %v1479
        %v1481 = vextract.high.u32 %v1479
        %v1482 = vmul.u32 %v1475, %v1466
        %v1483 = vadd.s32 %v1478, %v1480
        %vm1484 = vc.u32 %v1478, %v1480
        %v1485 = vadd.s32 %v1481, 1
        %v1486 = vsel %vm1484, %v1485, %v1481
        %v1487 = vadd.s32 %v1482, %v1486
        %v1488 = vadd.s32 %v1487, 536870912
        %v1489 = vshrl.u32 %v1488, 30
        %v1490 = vshll.u32 %v1489, 30
        %v1491 = vsub.s32 %v1487, %v1490
        %vm1492 = vcmp.lt.s32.totalorder %v1491, 0
        %v1493 = vsub.s32 0, %v1491
        %v1494 = vsel %vm1492, %v1493, %v1491
        %v1495 = vclz %v1494
        %v1496 = vsub.s32 %v1495, 2
        %vm1497 = vcmp.gt.s32.totalorder 0, %v1496
        %v1498 = vsel %vm1497, 0, %v1496
        %v1499 = vsub.s32 32, %v1498
        %v1500 = vshll.u32 %v1491, %v1498
        %v1501 = vshrl.u32 %v1483, %v1499
        %v1502 = vor.u32 %v1500, %v1501
        %v1503 = vsub.s32 4294967266, %v1498
        %v1504 = vadd.s32 %v1503, 127
        %v1505 = vshll.u32 %v1504, 23
        %v1506 = vor.u32 4788187, %v1505
        %v1507 = vand.u32 2147483647, %v1506
        %v1509 = vcvt.s32.f32 %v1502
        %v1510 = vmul.f32 %v1509, %v1507
        %v1511 = vxor.u32 %v1510, 2147483648
        %v1512 = vsel %vm1429, %v1511, %v1510
        %v1513 = vsub.s32 4, %v1489
        %v1514 = vsel %vm1429, %v1513, %v1489
        %v1515 = vsel %vm1428, %v579, %v1512
        %v1516 = vsel %vm1428, 0, %v1514
        %v1517 = vcosq.f32.pop %v1515
        %v1518 = vsinq.f32.pop %v1515
        %vm1519 = vweird.f32 %v579
        %v1520 = vadd.s32 %v1516, 3
        %v1521 = vand.u32 %v1520, 3
        %vm1522 = vcmp.lt.s32.totalorder %v1521, 2
        %vm1523 = vcmp.eq.s32.totalorder %v1521, 0
        %v1524 = vxor.u32 %v1518, 2147483648
        %v1525 = vsel %vm1523, %v1517, %v1524
        %vm1526 = vcmp.eq.s32.totalorder %v1521, 2
        %v1527 = vxor.u32 %v1517, 2147483648
        %v1528 = vsel %vm1526, %v1527, %v1518
        %v1529 = vsel %vm1522, %v1525, %v1528
        %v1530 = vsel %vm1519, nan, %v1529
        %v1531 = vand.u32 2147483647, %v580
        %vm1532 = vcmp.le.f32.partialorder %v1531, 0.7853982
        %vm1533 = vcmp.lt.s32.totalorder %v580, 0
        %v1534 = vand.u32 %v580, 2139095040
        %v1535 = vshrl.u32 %v1534, 23
        %v1536 = vsub.s32 %v1535, 127
        %v1537 = vand.u32 2147483647, %v580
        %v1538 = vand.u32 %v1537, 8388607
        %v1539 = vor.u32 %v1538, 8388608
        %v1540 = vsub.s32 0, %v1539
        %v1541 = vadd.s32 %v1536, 1
        %vm1542 = vcmp.gt.s32.totalorder %v1541, 0
        %v1543 = vsel %vm1542, %v1541, 0
        %v1544 = vshrl.u32 %v1543, 5
        %v1545 = vand.u32 %v1543, 31
        %v1546 = vsub.s32 32, %v1545
        %v1547 = vshrl.u32 683565275, %v1546
        %v1548 = vshll.u32 683565275, %v1545
        %v1549 = vshrl.u32 2475754826, %v1546
        %v1550 = vor.u32 %v1548, %v1549
        %v1551 = vshll.u32 2475754826, %v1545
        %v1552 = vshrl.u32 2131351028, %v1546
        %v1553 = vor.u32 %v1551, %v1552
        %v1554 = vshll.u32 2131351028, %v1545
        %v1555 = vshrl.u32 2102212464, %v1546
        %v1556 = vor.u32 %v1554, %v1555
        %v1557 = vshll.u32 2102212464, %v1545
        %v1558 = vshrl.u32 920167782, %v1546
        %v1559 = vor.u32 %v1557, %v1558
        %v1560 = vshll.u32 920167782, %v1545
        %v1561 = vshrl.u32 1326507024, %v1546
        %v1562 = vor.u32 %v1560, %v1561
        %vm1563 = vcmp.lt.s32.totalorder %v1544, 1
        %vm1564 = vcmp.lt.s32.totalorder %v1544, 2
        %vm1565 = vcmp.lt.s32.totalorder %v1544, 3
        %vm1566 = vcmp.lt.s32.totalorder %v1544, 4
        %v1567 = vsel %vm1563, %v1547, %v1550
        %v1568 = vsel %vm1566, %v1556, 2102212464
        %v1569 = vsel %vm1565, %v1553, %v1568
        %v1570 = vsel %vm1564, %v1567, %v1569
        %v1571 = vsel %vm1563, %v1550, %v1553
        %v1572 = vsel %vm1566, %v1559, 920167782
        %v1573 = vsel %vm1565, %v1556, %v1572
        %v1574 = vsel %vm1564, %v1571, %v1573
        %v1575 = vsel %vm1563, %v1553, %v1556
        %v1576 = vsel %vm1566, %v1562, 1326507024
        %v1577 = vsel %vm1565, %v1559, %v1576
        %v1578 = vsel %vm1564, %v1575, %v1577
        %v1579 = vshll.u32 %v1539, 8
        %v1580 = vmul.u32.u64.compose %v1579, %v1578
        %v1581 = vextract.low.u32 %v1580
        %v1582 = vextract.high.u32 %v1580
        %v1583 = vmul.u32.u64.compose %v1579, %v1574
        %v1584 = vextract.low.u32 %v1583
        %v1585 = vextract.high.u32 %v1583
        %v1586 = vmul.u32 %v1579, %v1570
        %v1587 = vadd.s32 %v1582, %v1584
        %vm1588 = vc.u32 %v1582, %v1584
        %v1589 = vadd.s32 %v1585, 1
        %v1590 = vsel %vm1588, %v1589, %v1585
        %v1591 = vadd.s32 %v1586, %v1590
        %v1592 = vadd.s32 %v1591, 536870912
        %v1593 = vshrl.u32 %v1592, 30
        %v1594 = vshll.u32 %v1593, 30
        %v1595 = vsub.s32 %v1591, %v1594
        %vm1596 = vcmp.lt.s32.totalorder %v1595, 0
        %v1597 = vsub.s32 0, %v1595
        %v1598 = vsel %vm1596, %v1597, %v1595
        %v1599 = vclz %v1598
        %v1600 = vsub.s32 %v1599, 2
        %vm1601 = vcmp.gt.s32.totalorder 0, %v1600
        %v1602 = vsel %vm1601, 0, %v1600
        %v1603 = vsub.s32 32, %v1602
        %v1604 = vshll.u32 %v1595, %v1602
        %v1605 = vshrl.u32 %v1587, %v1603
        %v1606 = vor.u32 %v1604, %v1605
        %v1607 = vsub.s32 4294967266, %v1602
        %v1608 = vadd.s32 %v1607, 127
        %v1609 = vshll.u32 %v1608, 23
        %v1610 = vor.u32 4788187, %v1609
        %v1611 = vand.u32 2147483647, %v1610
        %v1613 = vcvt.s32.f32 %v1606
        %v1614 = vmul.f32 %v1613, %v1611
        %v1615 = vxor.u32 %v1614, 2147483648
        %v1616 = vsel %vm1533, %v1615, %v1614
        %v1617 = vsub.s32 4, %v1593
        %v1618 = vsel %vm1533, %v1617, %v1593
        %v1619 = vsel %vm1532, %v580, %v1616
        %v1620 = vsel %vm1532, 0, %v1618
        %v1621 = vcosq.f32.pop %v1619
        %v1622 = vsinq.f32.pop %v1619
        %vm1623 = vweird.f32 %v580
        %v1624 = vadd.s32 %v1620, 3
        %v1625 = vand.u32 %v1624, 3
        %vm1626 = vcmp.lt.s32.totalorder %v1625, 2
        %vm1627 = vcmp.eq.s32.totalorder %v1625, 0
        %v1628 = vxor.u32 %v1622, 2147483648
        %v1629 = vsel %vm1627, %v1621, %v1628
        %vm1630 = vcmp.eq.s32.totalorder %v1625, 2
        %v1631 = vxor.u32 %v1621, 2147483648
        %v1632 = vsel %vm1630, %v1631, %v1622
        %v1633 = vsel %vm1626, %v1629, %v1632
        %v1634 = vsel %vm1623, nan, %v1633
        %v1635 = vand.u32 2147483647, %v581
        %vm1636 = vcmp.le.f32.partialorder %v1635, 0.7853982
        %vm1637 = vcmp.lt.s32.totalorder %v581, 0
        %v1638 = vand.u32 %v581, 2139095040
        %v1639 = vshrl.u32 %v1638, 23
        %v1640 = vsub.s32 %v1639, 127
        %v1641 = vand.u32 2147483647, %v581
        %v1642 = vand.u32 %v1641, 8388607
        %v1643 = vor.u32 %v1642, 8388608
        %v1644 = vsub.s32 0, %v1643
        %v1645 = vadd.s32 %v1640, 1
        %vm1646 = vcmp.gt.s32.totalorder %v1645, 0
        %v1647 = vsel %vm1646, %v1645, 0
        %v1648 = vshrl.u32 %v1647, 5
        %v1649 = vand.u32 %v1647, 31
        %v1650 = vsub.s32 32, %v1649
        %v1651 = vshrl.u32 683565275, %v1650
        %v1652 = vshll.u32 683565275, %v1649
        %v1653 = vshrl.u32 2475754826, %v1650
        %v1654 = vor.u32 %v1652, %v1653
        %v1655 = vshll.u32 2475754826, %v1649
        %v1656 = vshrl.u32 2131351028, %v1650
        %v1657 = vor.u32 %v1655, %v1656
        %v1658 = vshll.u32 2131351028, %v1649
        %v1659 = vshrl.u32 2102212464, %v1650
        %v1660 = vor.u32 %v1658, %v1659
        %v1661 = vshll.u32 2102212464, %v1649
        %v1662 = vshrl.u32 920167782, %v1650
        %v1663 = vor.u32 %v1661, %v1662
        %v1664 = vshll.u32 920167782, %v1649
        %v1665 = vshrl.u32 1326507024, %v1650
        %v1666 = vor.u32 %v1664, %v1665
        %vm1667 = vcmp.lt.s32.totalorder %v1648, 1
        %vm1668 = vcmp.lt.s32.totalorder %v1648, 2
        %vm1669 = vcmp.lt.s32.totalorder %v1648, 3
        %vm1670 = vcmp.lt.s32.totalorder %v1648, 4
        %v1671 = vsel %vm1667, %v1651, %v1654
        %v1672 = vsel %vm1670, %v1660, 2102212464
        %v1673 = vsel %vm1669, %v1657, %v1672
        %v1674 = vsel %vm1668, %v1671, %v1673
        %v1675 = vsel %vm1667, %v1654, %v1657
        %v1676 = vsel %vm1670, %v1663, 920167782
        %v1677 = vsel %vm1669, %v1660, %v1676
        %v1678 = vsel %vm1668, %v1675, %v1677
        %v1679 = vsel %vm1667, %v1657, %v1660
        %v1680 = vsel %vm1670, %v1666, 1326507024
        %v1681 = vsel %vm1669, %v1663, %v1680
        %v1682 = vsel %vm1668, %v1679, %v1681
        %v1683 = vshll.u32 %v1643, 8
        %v1684 = vmul.u32.u64.compose %v1683, %v1682
        %v1685 = vextract.low.u32 %v1684
        %v1686 = vextract.high.u32 %v1684
        %v1687 = vmul.u32.u64.compose %v1683, %v1678
        %v1688 = vextract.low.u32 %v1687
        %v1689 = vextract.high.u32 %v1687
        %v1690 = vmul.u32 %v1683, %v1674
        %v1691 = vadd.s32 %v1686, %v1688
        %vm1692 = vc.u32 %v1686, %v1688
        %v1693 = vadd.s32 %v1689, 1
        %v1694 = vsel %vm1692, %v1693, %v1689
        %v1695 = vadd.s32 %v1690, %v1694
        %v1696 = vadd.s32 %v1695, 536870912
        %v1697 = vshrl.u32 %v1696, 30
        %v1698 = vshll.u32 %v1697, 30
        %v1699 = vsub.s32 %v1695, %v1698
        %vm1700 = vcmp.lt.s32.totalorder %v1699, 0
        %v1701 = vsub.s32 0, %v1699
        %v1702 = vsel %vm1700, %v1701, %v1699
        %v1703 = vclz %v1702
        %v1704 = vsub.s32 %v1703, 2
        %vm1705 = vcmp.gt.s32.totalorder 0, %v1704
        %v1706 = vsel %vm1705, 0, %v1704
        %v1707 = vsub.s32 32, %v1706
        %v1708 = vshll.u32 %v1699, %v1706
        %v1709 = vshrl.u32 %v1691, %v1707
        %v1710 = vor.u32 %v1708, %v1709
        %v1711 = vsub.s32 4294967266, %v1706
        %v1712 = vadd.s32 %v1711, 127
        %v1713 = vshll.u32 %v1712, 23
        %v1714 = vor.u32 4788187, %v1713
        %v1715 = vand.u32 2147483647, %v1714
        %v1717 = vcvt.s32.f32 %v1710
        %v1718 = vmul.f32 %v1717, %v1715
        %v1719 = vxor.u32 %v1718, 2147483648
        %v1720 = vsel %vm1637, %v1719, %v1718
        %v1721 = vsub.s32 4, %v1697
        %v1722 = vsel %vm1637, %v1721, %v1697
        %v1723 = vsel %vm1636, %v581, %v1720
        %v1724 = vsel %vm1636, 0, %v1722
        %v1725 = vcosq.f32.pop %v1723
        %v1726 = vsinq.f32.pop %v1723
        %vm1727 = vweird.f32 %v581
        %v1728 = vadd.s32 %v1724, 3
        %v1729 = vand.u32 %v1728, 3
        %vm1730 = vcmp.lt.s32.totalorder %v1729, 2
        %vm1731 = vcmp.eq.s32.totalorder %v1729, 0
        %v1732 = vxor.u32 %v1726, 2147483648
        %v1733 = vsel %vm1731, %v1725, %v1732
        %vm1734 = vcmp.eq.s32.totalorder %v1729, 2
        %v1735 = vxor.u32 %v1725, 2147483648
        %v1736 = vsel %vm1734, %v1735, %v1726
        %v1737 = vsel %vm1730, %v1733, %v1736
        %v1738 = vsel %vm1727, nan, %v1737
        %v1739 = vand.u32 2147483647, %v582
        %vm1740 = vcmp.le.f32.partialorder %v1739, 0.7853982
        %vm1741 = vcmp.lt.s32.totalorder %v582, 0
        %v1742 = vand.u32 %v582, 2139095040
        %v1743 = vshrl.u32 %v1742, 23
        %v1744 = vsub.s32 %v1743, 127
        %v1745 = vand.u32 2147483647, %v582
        %v1746 = vand.u32 %v1745, 8388607
        %v1747 = vor.u32 %v1746, 8388608
        %v1748 = vsub.s32 0, %v1747
        %v1749 = vadd.s32 %v1744, 1
        %vm1750 = vcmp.gt.s32.totalorder %v1749, 0
        %v1751 = vsel %vm1750, %v1749, 0
        %v1752 = vshrl.u32 %v1751, 5
        %v1753 = vand.u32 %v1751, 31
        %v1754 = vsub.s32 32, %v1753
        %v1755 = vshrl.u32 683565275, %v1754
        %v1756 = vshll.u32 683565275, %v1753
        %v1757 = vshrl.u32 2475754826, %v1754
        %v1758 = vor.u32 %v1756, %v1757
        %v1759 = vshll.u32 2475754826, %v1753
        %v1760 = vshrl.u32 2131351028, %v1754
        %v1761 = vor.u32 %v1759, %v1760
        %v1762 = vshll.u32 2131351028, %v1753
        %v1763 = vshrl.u32 2102212464, %v1754
        %v1764 = vor.u32 %v1762, %v1763
        %v1765 = vshll.u32 2102212464, %v1753
        %v1766 = vshrl.u32 920167782, %v1754
        %v1767 = vor.u32 %v1765, %v1766
        %v1768 = vshll.u32 920167782, %v1753
        %v1769 = vshrl.u32 1326507024, %v1754
        %v1770 = vor.u32 %v1768, %v1769
        %vm1771 = vcmp.lt.s32.totalorder %v1752, 1
        %vm1772 = vcmp.lt.s32.totalorder %v1752, 2
        %vm1773 = vcmp.lt.s32.totalorder %v1752, 3
        %vm1774 = vcmp.lt.s32.totalorder %v1752, 4
        %v1775 = vsel %vm1771, %v1755, %v1758
        %v1776 = vsel %vm1774, %v1764, 2102212464
        %v1777 = vsel %vm1773, %v1761, %v1776
        %v1778 = vsel %vm1772, %v1775, %v1777
        %v1779 = vsel %vm1771, %v1758, %v1761
        %v1780 = vsel %vm1774, %v1767, 920167782
        %v1781 = vsel %vm1773, %v1764, %v1780
        %v1782 = vsel %vm1772, %v1779, %v1781
        %v1783 = vsel %vm1771, %v1761, %v1764
        %v1784 = vsel %vm1774, %v1770, 1326507024
        %v1785 = vsel %vm1773, %v1767, %v1784
        %v1786 = vsel %vm1772, %v1783, %v1785
        %v1787 = vshll.u32 %v1747, 8
        %v1788 = vmul.u32.u64.compose %v1787, %v1786
        %v1789 = vextract.low.u32 %v1788
        %v1790 = vextract.high.u32 %v1788
        %v1791 = vmul.u32.u64.compose %v1787, %v1782
        %v1792 = vextract.low.u32 %v1791
        %v1793 = vextract.high.u32 %v1791
        %v1794 = vmul.u32 %v1787, %v1778
        %v1795 = vadd.s32 %v1790, %v1792
        %vm1796 = vc.u32 %v1790, %v1792
        %v1797 = vadd.s32 %v1793, 1
        %v1798 = vsel %vm1796, %v1797, %v1793
        %v1799 = vadd.s32 %v1794, %v1798
        %v1800 = vadd.s32 %v1799, 536870912
        %v1801 = vshrl.u32 %v1800, 30
        %v1802 = vshll.u32 %v1801, 30
        %v1803 = vsub.s32 %v1799, %v1802
        %vm1804 = vcmp.lt.s32.totalorder %v1803, 0
        %v1805 = vsub.s32 0, %v1803
        %v1806 = vsel %vm1804, %v1805, %v1803
        %v1807 = vclz %v1806
        %v1808 = vsub.s32 %v1807, 2
        %vm1809 = vcmp.gt.s32.totalorder 0, %v1808
        %v1810 = vsel %vm1809, 0, %v1808
        %v1811 = vsub.s32 32, %v1810
        %v1812 = vshll.u32 %v1803, %v1810
        %v1813 = vshrl.u32 %v1795, %v1811
        %v1814 = vor.u32 %v1812, %v1813
        %v1815 = vsub.s32 4294967266, %v1810
        %v1816 = vadd.s32 %v1815, 127
        %v1817 = vshll.u32 %v1816, 23
        %v1818 = vor.u32 4788187, %v1817
        %v1819 = vand.u32 2147483647, %v1818
        %v1821 = vcvt.s32.f32 %v1814
        %v1822 = vmul.f32 %v1821, %v1819
        %v1823 = vxor.u32 %v1822, 2147483648
        %v1824 = vsel %vm1741, %v1823, %v1822
        %v1825 = vsub.s32 4, %v1801
        %v1826 = vsel %vm1741, %v1825, %v1801
        %v1827 = vsel %vm1740, %v582, %v1824
        %v1828 = vsel %vm1740, 0, %v1826
        %v1829 = vcosq.f32.pop %v1827
        %v1830 = vsinq.f32.pop %v1827
        %vm1831 = vweird.f32 %v582
        %v1832 = vadd.s32 %v1828, 3
        %v1833 = vand.u32 %v1832, 3
        %vm1834 = vcmp.lt.s32.totalorder %v1833, 2
        %vm1835 = vcmp.eq.s32.totalorder %v1833, 0
        %v1836 = vxor.u32 %v1830, 2147483648
        %v1837 = vsel %vm1835, %v1829, %v1836
        %vm1838 = vcmp.eq.s32.totalorder %v1833, 2
        %v1839 = vxor.u32 %v1829, 2147483648
        %v1840 = vsel %vm1838, %v1839, %v1830
        %v1841 = vsel %vm1834, %v1837, %v1840
        %v1842 = vsel %vm1831, nan, %v1841
        %v1843 = vand.u32 2147483647, %v583
        %vm1844 = vcmp.le.f32.partialorder %v1843, 0.7853982
        %vm1845 = vcmp.lt.s32.totalorder %v583, 0
        %v1846 = vand.u32 %v583, 2139095040
        %v1847 = vshrl.u32 %v1846, 23
        %v1848 = vsub.s32 %v1847, 127
        %v1849 = vand.u32 2147483647, %v583
        %v1850 = vand.u32 %v1849, 8388607
        %v1851 = vor.u32 %v1850, 8388608
        %v1852 = vsub.s32 0, %v1851
        %v1853 = vadd.s32 %v1848, 1
        %vm1854 = vcmp.gt.s32.totalorder %v1853, 0
        %v1855 = vsel %vm1854, %v1853, 0
        %v1856 = vshrl.u32 %v1855, 5
        %v1857 = vand.u32 %v1855, 31
        %v1858 = vsub.s32 32, %v1857
        %v1859 = vshrl.u32 683565275, %v1858
        %v1860 = vshll.u32 683565275, %v1857
        %v1861 = vshrl.u32 2475754826, %v1858
        %v1862 = vor.u32 %v1860, %v1861
        %v1863 = vshll.u32 2475754826, %v1857
        %v1864 = vshrl.u32 2131351028, %v1858
        %v1865 = vor.u32 %v1863, %v1864
        %v1866 = vshll.u32 2131351028, %v1857
        %v1867 = vshrl.u32 2102212464, %v1858
        %v1868 = vor.u32 %v1866, %v1867
        %v1869 = vshll.u32 2102212464, %v1857
        %v1870 = vshrl.u32 920167782, %v1858
        %v1871 = vor.u32 %v1869, %v1870
        %v1872 = vshll.u32 920167782, %v1857
        %v1873 = vshrl.u32 1326507024, %v1858
        %v1874 = vor.u32 %v1872, %v1873
        %vm1875 = vcmp.lt.s32.totalorder %v1856, 1
        %vm1876 = vcmp.lt.s32.totalorder %v1856, 2
        %vm1877 = vcmp.lt.s32.totalorder %v1856, 3
        %vm1878 = vcmp.lt.s32.totalorder %v1856, 4
        %v1879 = vsel %vm1875, %v1859, %v1862
        %v1880 = vsel %vm1878, %v1868, 2102212464
        %v1881 = vsel %vm1877, %v1865, %v1880
        %v1882 = vsel %vm1876, %v1879, %v1881
        %v1883 = vsel %vm1875, %v1862, %v1865
        %v1884 = vsel %vm1878, %v1871, 920167782
        %v1885 = vsel %vm1877, %v1868, %v1884
        %v1886 = vsel %vm1876, %v1883, %v1885
        %v1887 = vsel %vm1875, %v1865, %v1868
        %v1888 = vsel %vm1878, %v1874, 1326507024
        %v1889 = vsel %vm1877, %v1871, %v1888
        %v1890 = vsel %vm1876, %v1887, %v1889
        %v1891 = vshll.u32 %v1851, 8
        %v1892 = vmul.u32.u64.compose %v1891, %v1890
        %v1893 = vextract.low.u32 %v1892
        %v1894 = vextract.high.u32 %v1892
        %v1895 = vmul.u32.u64.compose %v1891, %v1886
        %v1896 = vextract.low.u32 %v1895
        %v1897 = vextract.high.u32 %v1895
        %v1898 = vmul.u32 %v1891, %v1882
        %v1899 = vadd.s32 %v1894, %v1896
        %vm1900 = vc.u32 %v1894, %v1896
        %v1901 = vadd.s32 %v1897, 1
        %v1902 = vsel %vm1900, %v1901, %v1897
        %v1903 = vadd.s32 %v1898, %v1902
        %v1904 = vadd.s32 %v1903, 536870912
        %v1905 = vshrl.u32 %v1904, 30
        %v1906 = vshll.u32 %v1905, 30
        %v1907 = vsub.s32 %v1903, %v1906
        %vm1908 = vcmp.lt.s32.totalorder %v1907, 0
        %v1909 = vsub.s32 0, %v1907
        %v1910 = vsel %vm1908, %v1909, %v1907
        %v1911 = vclz %v1910
        %v1912 = vsub.s32 %v1911, 2
        %vm1913 = vcmp.gt.s32.totalorder 0, %v1912
        %v1914 = vsel %vm1913, 0, %v1912
        %v1915 = vsub.s32 32, %v1914
        %v1916 = vshll.u32 %v1907, %v1914
        %v1917 = vshrl.u32 %v1899, %v1915
        %v1918 = vor.u32 %v1916, %v1917
        %v1919 = vsub.s32 4294967266, %v1914
        %v1920 = vadd.s32 %v1919, 127
        %v1921 = vshll.u32 %v1920, 23
        %v1922 = vor.u32 4788187, %v1921
        %v1923 = vand.u32 2147483647, %v1922
        %v1925 = vcvt.s32.f32 %v1918
        %v1926 = vmul.f32 %v1925, %v1923
        %v1927 = vxor.u32 %v1926, 2147483648
        %v1928 = vsel %vm1845, %v1927, %v1926
        %v1929 = vsub.s32 4, %v1905
        %v1930 = vsel %vm1845, %v1929, %v1905
        %v1931 = vsel %vm1844, %v583, %v1928
        %v1932 = vsel %vm1844, 0, %v1930
        %v1933 = vcosq.f32.pop %v1931
        %v1934 = vsinq.f32.pop %v1931
        %vm1935 = vweird.f32 %v583
        %v1936 = vadd.s32 %v1932, 3
        %v1937 = vand.u32 %v1936, 3
        %vm1938 = vcmp.lt.s32.totalorder %v1937, 2
        %vm1939 = vcmp.eq.s32.totalorder %v1937, 0
        %v1940 = vxor.u32 %v1934, 2147483648
        %v1941 = vsel %vm1939, %v1933, %v1940
        %vm1942 = vcmp.eq.s32.totalorder %v1937, 2
        %v1943 = vxor.u32 %v1933, 2147483648
        %v1944 = vsel %vm1942, %v1943, %v1934
        %v1945 = vsel %vm1938, %v1941, %v1944
        %v1946 = vsel %vm1935, nan, %v1945
        %v1947 = vand.u32 2147483647, %v584
        %vm1948 = vcmp.le.f32.partialorder %v1947, 0.7853982
        %vm1949 = vcmp.lt.s32.totalorder %v584, 0
        %v1950 = vand.u32 %v584, 2139095040
        %v1951 = vshrl.u32 %v1950, 23
        %v1952 = vsub.s32 %v1951, 127
        %v1953 = vand.u32 2147483647, %v584
        %v1954 = vand.u32 %v1953, 8388607
        %v1955 = vor.u32 %v1954, 8388608
        %v1956 = vsub.s32 0, %v1955
        %v1957 = vadd.s32 %v1952, 1
        %vm1958 = vcmp.gt.s32.totalorder %v1957, 0
        %v1959 = vsel %vm1958, %v1957, 0
        %v1960 = vshrl.u32 %v1959, 5
        %v1961 = vand.u32 %v1959, 31
        %v1962 = vsub.s32 32, %v1961
        %v1963 = vshrl.u32 683565275, %v1962
        %v1964 = vshll.u32 683565275, %v1961
        %v1965 = vshrl.u32 2475754826, %v1962
        %v1966 = vor.u32 %v1964, %v1965
        %v1967 = vshll.u32 2475754826, %v1961
        %v1968 = vshrl.u32 2131351028, %v1962
        %v1969 = vor.u32 %v1967, %v1968
        %v1970 = vshll.u32 2131351028, %v1961
        %v1971 = vshrl.u32 2102212464, %v1962
        %v1972 = vor.u32 %v1970, %v1971
        %v1973 = vshll.u32 2102212464, %v1961
        %v1974 = vshrl.u32 920167782, %v1962
        %v1975 = vor.u32 %v1973, %v1974
        %v1976 = vshll.u32 920167782, %v1961
        %v1977 = vshrl.u32 1326507024, %v1962
        %v1978 = vor.u32 %v1976, %v1977
        %vm1979 = vcmp.lt.s32.totalorder %v1960, 1
        %vm1980 = vcmp.lt.s32.totalorder %v1960, 2
        %vm1981 = vcmp.lt.s32.totalorder %v1960, 3
        %vm1982 = vcmp.lt.s32.totalorder %v1960, 4
        %v1983 = vsel %vm1979, %v1963, %v1966
        %v1984 = vsel %vm1982, %v1972, 2102212464
        %v1985 = vsel %vm1981, %v1969, %v1984
        %v1986 = vsel %vm1980, %v1983, %v1985
        %v1987 = vsel %vm1979, %v1966, %v1969
        %v1988 = vsel %vm1982, %v1975, 920167782
        %v1989 = vsel %vm1981, %v1972, %v1988
        %v1990 = vsel %vm1980, %v1987, %v1989
        %v1991 = vsel %vm1979, %v1969, %v1972
        %v1992 = vsel %vm1982, %v1978, 1326507024
        %v1993 = vsel %vm1981, %v1975, %v1992
        %v1994 = vsel %vm1980, %v1991, %v1993
        %v1995 = vshll.u32 %v1955, 8
        %v1996 = vmul.u32.u64.compose %v1995, %v1994
        %v1997 = vextract.low.u32 %v1996
        %v1998 = vextract.high.u32 %v1996
        %v1999 = vmul.u32.u64.compose %v1995, %v1990
        %v2000 = vextract.low.u32 %v1999
        %v2001 = vextract.high.u32 %v1999
        %v2002 = vmul.u32 %v1995, %v1986
        %v2003 = vadd.s32 %v1998, %v2000
        %vm2004 = vc.u32 %v1998, %v2000
        %v2005 = vadd.s32 %v2001, 1
        %v2006 = vsel %vm2004, %v2005, %v2001
        %v2007 = vadd.s32 %v2002, %v2006
        %v2008 = vadd.s32 %v2007, 536870912
        %v2009 = vshrl.u32 %v2008, 30
        %v2010 = vshll.u32 %v2009, 30
        %v2011 = vsub.s32 %v2007, %v2010
        %vm2012 = vcmp.lt.s32.totalorder %v2011, 0
        %v2013 = vsub.s32 0, %v2011
        %v2014 = vsel %vm2012, %v2013, %v2011
        %v2015 = vclz %v2014
        %v2016 = vsub.s32 %v2015, 2
        %vm2017 = vcmp.gt.s32.totalorder 0, %v2016
        %v2018 = vsel %vm2017, 0, %v2016
        %v2019 = vsub.s32 32, %v2018
        %v2020 = vshll.u32 %v2011, %v2018
        %v2021 = vshrl.u32 %v2003, %v2019
        %v2022 = vor.u32 %v2020, %v2021
        %v2023 = vsub.s32 4294967266, %v2018
        %v2024 = vadd.s32 %v2023, 127
        %v2025 = vshll.u32 %v2024, 23
        %v2026 = vor.u32 4788187, %v2025
        %v2027 = vand.u32 2147483647, %v2026
        %v2029 = vcvt.s32.f32 %v2022
        %v2030 = vmul.f32 %v2029, %v2027
        %v2031 = vxor.u32 %v2030, 2147483648
        %v2032 = vsel %vm1949, %v2031, %v2030
        %v2033 = vsub.s32 4, %v2009
        %v2034 = vsel %vm1949, %v2033, %v2009
        %v2035 = vsel %vm1948, %v584, %v2032
        %v2036 = vsel %vm1948, 0, %v2034
        %v2037 = vcosq.f32.pop %v2035
        %v2038 = vsinq.f32.pop %v2035
        %vm2039 = vweird.f32 %v584
        %v2040 = vadd.s32 %v2036, 3
        %v2041 = vand.u32 %v2040, 3
        %vm2042 = vcmp.lt.s32.totalorder %v2041, 2
        %vm2043 = vcmp.eq.s32.totalorder %v2041, 0
        %v2044 = vxor.u32 %v2038, 2147483648
        %v2045 = vsel %vm2043, %v2037, %v2044
        %vm2046 = vcmp.eq.s32.totalorder %v2041, 2
        %v2047 = vxor.u32 %v2037, 2147483648
        %v2048 = vsel %vm2046, %v2047, %v2038
        %v2049 = vsel %vm2042, %v2045, %v2048
        %v2050 = vsel %vm2039, nan, %v2049
        %v2051 = vand.u32 2147483647, %v585
        %vm2052 = vcmp.le.f32.partialorder %v2051, 0.7853982
        %vm2053 = vcmp.lt.s32.totalorder %v585, 0
        %v2054 = vand.u32 %v585, 2139095040
        %v2055 = vshrl.u32 %v2054, 23
        %v2056 = vsub.s32 %v2055, 127
        %v2057 = vand.u32 2147483647, %v585
        %v2058 = vand.u32 %v2057, 8388607
        %v2059 = vor.u32 %v2058, 8388608
        %v2060 = vsub.s32 0, %v2059
        %v2061 = vadd.s32 %v2056, 1
        %vm2062 = vcmp.gt.s32.totalorder %v2061, 0
        %v2063 = vsel %vm2062, %v2061, 0
        %v2064 = vshrl.u32 %v2063, 5
        %v2065 = vand.u32 %v2063, 31
        %v2066 = vsub.s32 32, %v2065
        %v2067 = vshrl.u32 683565275, %v2066
        %v2068 = vshll.u32 683565275, %v2065
        %v2069 = vshrl.u32 2475754826, %v2066
        %v2070 = vor.u32 %v2068, %v2069
        %v2071 = vshll.u32 2475754826, %v2065
        %v2072 = vshrl.u32 2131351028, %v2066
        %v2073 = vor.u32 %v2071, %v2072
        %v2074 = vshll.u32 2131351028, %v2065
        %v2075 = vshrl.u32 2102212464, %v2066
        %v2076 = vor.u32 %v2074, %v2075
        %v2077 = vshll.u32 2102212464, %v2065
        %v2078 = vshrl.u32 920167782, %v2066
        %v2079 = vor.u32 %v2077, %v2078
        %v2080 = vshll.u32 920167782, %v2065
        %v2081 = vshrl.u32 1326507024, %v2066
        %v2082 = vor.u32 %v2080, %v2081
        %vm2083 = vcmp.lt.s32.totalorder %v2064, 1
        %vm2084 = vcmp.lt.s32.totalorder %v2064, 2
        %vm2085 = vcmp.lt.s32.totalorder %v2064, 3
        %vm2086 = vcmp.lt.s32.totalorder %v2064, 4
        %v2087 = vsel %vm2083, %v2067, %v2070
        %v2088 = vsel %vm2086, %v2076, 2102212464
        %v2089 = vsel %vm2085, %v2073, %v2088
        %v2090 = vsel %vm2084, %v2087, %v2089
        %v2091 = vsel %vm2083, %v2070, %v2073
        %v2092 = vsel %vm2086, %v2079, 920167782
        %v2093 = vsel %vm2085, %v2076, %v2092
        %v2094 = vsel %vm2084, %v2091, %v2093
        %v2095 = vsel %vm2083, %v2073, %v2076
        %v2096 = vsel %vm2086, %v2082, 1326507024
        %v2097 = vsel %vm2085, %v2079, %v2096
        %v2098 = vsel %vm2084, %v2095, %v2097
        %v2099 = vshll.u32 %v2059, 8
        %v2100 = vmul.u32.u64.compose %v2099, %v2098
        %v2101 = vextract.low.u32 %v2100
        %v2102 = vextract.high.u32 %v2100
        %v2103 = vmul.u32.u64.compose %v2099, %v2094
        %v2104 = vextract.low.u32 %v2103
        %v2105 = vextract.high.u32 %v2103
        %v2106 = vmul.u32 %v2099, %v2090
        %v2107 = vadd.s32 %v2102, %v2104
        %vm2108 = vc.u32 %v2102, %v2104
        %v2109 = vadd.s32 %v2105, 1
        %v2110 = vsel %vm2108, %v2109, %v2105
        %v2111 = vadd.s32 %v2106, %v2110
        %v2112 = vadd.s32 %v2111, 536870912
        %v2113 = vshrl.u32 %v2112, 30
        %v2114 = vshll.u32 %v2113, 30
        %v2115 = vsub.s32 %v2111, %v2114
        %vm2116 = vcmp.lt.s32.totalorder %v2115, 0
        %v2117 = vsub.s32 0, %v2115
        %v2118 = vsel %vm2116, %v2117, %v2115
        %v2119 = vclz %v2118
        %v2120 = vsub.s32 %v2119, 2
        %vm2121 = vcmp.gt.s32.totalorder 0, %v2120
        %v2122 = vsel %vm2121, 0, %v2120
        %v2123 = vsub.s32 32, %v2122
        %v2124 = vshll.u32 %v2115, %v2122
        %v2125 = vshrl.u32 %v2107, %v2123
        %v2126 = vor.u32 %v2124, %v2125
        %v2127 = vsub.s32 4294967266, %v2122
        %v2128 = vadd.s32 %v2127, 127
        %v2129 = vshll.u32 %v2128, 23
        %v2130 = vor.u32 4788187, %v2129
        %v2131 = vand.u32 2147483647, %v2130
        %v2133 = vcvt.s32.f32 %v2126
        %v2134 = vmul.f32 %v2133, %v2131
        %v2135 = vxor.u32 %v2134, 2147483648
        %v2136 = vsel %vm2053, %v2135, %v2134
        %v2137 = vsub.s32 4, %v2113
        %v2138 = vsel %vm2053, %v2137, %v2113
        %v2139 = vsel %vm2052, %v585, %v2136
        %v2140 = vsel %vm2052, 0, %v2138
        %v2141 = vcosq.f32.pop %v2139
        %v2142 = vsinq.f32.pop %v2139
        %vm2143 = vweird.f32 %v585
        %v2144 = vadd.s32 %v2140, 3
        %v2145 = vand.u32 %v2144, 3
        %vm2146 = vcmp.lt.s32.totalorder %v2145, 2
        %vm2147 = vcmp.eq.s32.totalorder %v2145, 0
        %v2148 = vxor.u32 %v2142, 2147483648
        %v2149 = vsel %vm2147, %v2141, %v2148
        %vm2150 = vcmp.eq.s32.totalorder %v2145, 2
        %v2151 = vxor.u32 %v2141, 2147483648
        %v2152 = vsel %vm2150, %v2151, %v2142
        %v2153 = vsel %vm2146, %v2149, %v2152
        %v2154 = vsel %vm2143, nan, %v2153
        %v2155 = vand.u32 2147483647, %v586
        %vm2156 = vcmp.le.f32.partialorder %v2155, 0.7853982
        %vm2157 = vcmp.lt.s32.totalorder %v586, 0
        %v2158 = vand.u32 %v586, 2139095040
        %v2159 = vshrl.u32 %v2158, 23
        %v2160 = vsub.s32 %v2159, 127
        %v2161 = vand.u32 2147483647, %v586
        %v2162 = vand.u32 %v2161, 8388607
        %v2163 = vor.u32 %v2162, 8388608
        %v2164 = vsub.s32 0, %v2163
        %v2165 = vadd.s32 %v2160, 1
        %vm2166 = vcmp.gt.s32.totalorder %v2165, 0
        %v2167 = vsel %vm2166, %v2165, 0
        %v2168 = vshrl.u32 %v2167, 5
        %v2169 = vand.u32 %v2167, 31
        %v2170 = vsub.s32 32, %v2169
        %v2171 = vshrl.u32 683565275, %v2170
        %v2172 = vshll.u32 683565275, %v2169
        %v2173 = vshrl.u32 2475754826, %v2170
        %v2174 = vor.u32 %v2172, %v2173
        %v2175 = vshll.u32 2475754826, %v2169
        %v2176 = vshrl.u32 2131351028, %v2170
        %v2177 = vor.u32 %v2175, %v2176
        %v2178 = vshll.u32 2131351028, %v2169
        %v2179 = vshrl.u32 2102212464, %v2170
        %v2180 = vor.u32 %v2178, %v2179
        %v2181 = vshll.u32 2102212464, %v2169
        %v2182 = vshrl.u32 920167782, %v2170
        %v2183 = vor.u32 %v2181, %v2182
        %v2184 = vshll.u32 920167782, %v2169
        %v2185 = vshrl.u32 1326507024, %v2170
        %v2186 = vor.u32 %v2184, %v2185
        %vm2187 = vcmp.lt.s32.totalorder %v2168, 1
        %vm2188 = vcmp.lt.s32.totalorder %v2168, 2
        %vm2189 = vcmp.lt.s32.totalorder %v2168, 3
        %vm2190 = vcmp.lt.s32.totalorder %v2168, 4
        %v2191 = vsel %vm2187, %v2171, %v2174
        %v2192 = vsel %vm2190, %v2180, 2102212464
        %v2193 = vsel %vm2189, %v2177, %v2192
        %v2194 = vsel %vm2188, %v2191, %v2193
        %v2195 = vsel %vm2187, %v2174, %v2177
        %v2196 = vsel %vm2190, %v2183, 920167782
        %v2197 = vsel %vm2189, %v2180, %v2196
        %v2198 = vsel %vm2188, %v2195, %v2197
        %v2199 = vsel %vm2187, %v2177, %v2180
        %v2200 = vsel %vm2190, %v2186, 1326507024
        %v2201 = vsel %vm2189, %v2183, %v2200
        %v2202 = vsel %vm2188, %v2199, %v2201
        %v2203 = vshll.u32 %v2163, 8
        %v2204 = vmul.u32.u64.compose %v2203, %v2202
        %v2205 = vextract.low.u32 %v2204
        %v2206 = vextract.high.u32 %v2204
        %v2207 = vmul.u32.u64.compose %v2203, %v2198
        %v2208 = vextract.low.u32 %v2207
        %v2209 = vextract.high.u32 %v2207
        %v2210 = vmul.u32 %v2203, %v2194
        %v2211 = vadd.s32 %v2206, %v2208
        %vm2212 = vc.u32 %v2206, %v2208
        %v2213 = vadd.s32 %v2209, 1
        %v2214 = vsel %vm2212, %v2213, %v2209
        %v2215 = vadd.s32 %v2210, %v2214
        %v2216 = vadd.s32 %v2215, 536870912
        %v2217 = vshrl.u32 %v2216, 30
        %v2218 = vshll.u32 %v2217, 30
        %v2219 = vsub.s32 %v2215, %v2218
        %vm2220 = vcmp.lt.s32.totalorder %v2219, 0
        %v2221 = vsub.s32 0, %v2219
        %v2222 = vsel %vm2220, %v2221, %v2219
        %v2223 = vclz %v2222
        %v2224 = vsub.s32 %v2223, 2
        %vm2225 = vcmp.gt.s32.totalorder 0, %v2224
        %v2226 = vsel %vm2225, 0, %v2224
        %v2227 = vsub.s32 32, %v2226
        %v2228 = vshll.u32 %v2219, %v2226
        %v2229 = vshrl.u32 %v2211, %v2227
        %v2230 = vor.u32 %v2228, %v2229
        %v2231 = vsub.s32 4294967266, %v2226
        %v2232 = vadd.s32 %v2231, 127
        %v2233 = vshll.u32 %v2232, 23
        %v2234 = vor.u32 4788187, %v2233
        %v2235 = vand.u32 2147483647, %v2234
        %v2237 = vcvt.s32.f32 %v2230
        %v2238 = vmul.f32 %v2237, %v2235
        %v2239 = vxor.u32 %v2238, 2147483648
        %v2240 = vsel %vm2157, %v2239, %v2238
        %v2241 = vsub.s32 4, %v2217
        %v2242 = vsel %vm2157, %v2241, %v2217
        %v2243 = vsel %vm2156, %v586, %v2240
        %v2244 = vsel %vm2156, 0, %v2242
        %v2245 = vcosq.f32.pop %v2243
        %v2246 = vsinq.f32.pop %v2243
        %vm2247 = vweird.f32 %v586
        %v2248 = vadd.s32 %v2244, 3
        %v2249 = vand.u32 %v2248, 3
        %vm2250 = vcmp.lt.s32.totalorder %v2249, 2
        %vm2251 = vcmp.eq.s32.totalorder %v2249, 0
        %v2252 = vxor.u32 %v2246, 2147483648
        %v2253 = vsel %vm2251, %v2245, %v2252
        %vm2254 = vcmp.eq.s32.totalorder %v2249, 2
        %v2255 = vxor.u32 %v2245, 2147483648
        %v2256 = vsel %vm2254, %v2255, %v2246
        %v2257 = vsel %vm2250, %v2253, %v2256
        %v2258 = vsel %vm2247, nan, %v2257
        %v2259 = vand.u32 2147483647, %v587
        %vm2260 = vcmp.le.f32.partialorder %v2259, 0.7853982
        %vm2261 = vcmp.lt.s32.totalorder %v587, 0
        %v2262 = vand.u32 %v587, 2139095040
        %v2263 = vshrl.u32 %v2262, 23
        %v2264 = vsub.s32 %v2263, 127
        %v2265 = vand.u32 2147483647, %v587
        %v2266 = vand.u32 %v2265, 8388607
        %v2267 = vor.u32 %v2266, 8388608
        %v2268 = vsub.s32 0, %v2267
        %v2269 = vadd.s32 %v2264, 1
        %vm2270 = vcmp.gt.s32.totalorder %v2269, 0
        %v2271 = vsel %vm2270, %v2269, 0
        %v2272 = vshrl.u32 %v2271, 5
        %v2273 = vand.u32 %v2271, 31
        %v2274 = vsub.s32 32, %v2273
        %v2275 = vshrl.u32 683565275, %v2274
        %v2276 = vshll.u32 683565275, %v2273
        %v2277 = vshrl.u32 2475754826, %v2274
        %v2278 = vor.u32 %v2276, %v2277
        %v2279 = vshll.u32 2475754826, %v2273
        %v2280 = vshrl.u32 2131351028, %v2274
        %v2281 = vor.u32 %v2279, %v2280
        %v2282 = vshll.u32 2131351028, %v2273
        %v2283 = vshrl.u32 2102212464, %v2274
        %v2284 = vor.u32 %v2282, %v2283
        %v2285 = vshll.u32 2102212464, %v2273
        %v2286 = vshrl.u32 920167782, %v2274
        %v2287 = vor.u32 %v2285, %v2286
        %v2288 = vshll.u32 920167782, %v2273
        %v2289 = vshrl.u32 1326507024, %v2274
        %v2290 = vor.u32 %v2288, %v2289
        %vm2291 = vcmp.lt.s32.totalorder %v2272, 1
        %vm2292 = vcmp.lt.s32.totalorder %v2272, 2
        %vm2293 = vcmp.lt.s32.totalorder %v2272, 3
        %vm2294 = vcmp.lt.s32.totalorder %v2272, 4
        %v2295 = vsel %vm2291, %v2275, %v2278
        %v2296 = vsel %vm2294, %v2284, 2102212464
        %v2297 = vsel %vm2293, %v2281, %v2296
        %v2298 = vsel %vm2292, %v2295, %v2297
        %v2299 = vsel %vm2291, %v2278, %v2281
        %v2300 = vsel %vm2294, %v2287, 920167782
        %v2301 = vsel %vm2293, %v2284, %v2300
        %v2302 = vsel %vm2292, %v2299, %v2301
        %v2303 = vsel %vm2291, %v2281, %v2284
        %v2304 = vsel %vm2294, %v2290, 1326507024
        %v2305 = vsel %vm2293, %v2287, %v2304
        %v2306 = vsel %vm2292, %v2303, %v2305
        %v2307 = vshll.u32 %v2267, 8
        %v2308 = vmul.u32.u64.compose %v2307, %v2306
        %v2309 = vextract.low.u32 %v2308
        %v2310 = vextract.high.u32 %v2308
        %v2311 = vmul.u32.u64.compose %v2307, %v2302
        %v2312 = vextract.low.u32 %v2311
        %v2313 = vextract.high.u32 %v2311
        %v2314 = vmul.u32 %v2307, %v2298
        %v2315 = vadd.s32 %v2310, %v2312
        %vm2316 = vc.u32 %v2310, %v2312
        %v2317 = vadd.s32 %v2313, 1
        %v2318 = vsel %vm2316, %v2317, %v2313
        %v2319 = vadd.s32 %v2314, %v2318
        %v2320 = vadd.s32 %v2319, 536870912
        %v2321 = vshrl.u32 %v2320, 30
        %v2322 = vshll.u32 %v2321, 30
        %v2323 = vsub.s32 %v2319, %v2322
        %vm2324 = vcmp.lt.s32.totalorder %v2323, 0
        %v2325 = vsub.s32 0, %v2323
        %v2326 = vsel %vm2324, %v2325, %v2323
        %v2327 = vclz %v2326
        %v2328 = vsub.s32 %v2327, 2
        %vm2329 = vcmp.gt.s32.totalorder 0, %v2328
        %v2330 = vsel %vm2329, 0, %v2328
        %v2331 = vsub.s32 32, %v2330
        %v2332 = vshll.u32 %v2323, %v2330
        %v2333 = vshrl.u32 %v2315, %v2331
        %v2334 = vor.u32 %v2332, %v2333
        %v2335 = vsub.s32 4294967266, %v2330
        %v2336 = vadd.s32 %v2335, 127
        %v2337 = vshll.u32 %v2336, 23
        %v2338 = vor.u32 4788187, %v2337
        %v2339 = vand.u32 2147483647, %v2338
        %v2341 = vcvt.s32.f32 %v2334
        %v2342 = vmul.f32 %v2341, %v2339
        %v2343 = vxor.u32 %v2342, 2147483648
        %v2344 = vsel %vm2261, %v2343, %v2342
        %v2345 = vsub.s32 4, %v2321
        %v2346 = vsel %vm2261, %v2345, %v2321
        %v2347 = vsel %vm2260, %v587, %v2344
        %v2348 = vsel %vm2260, 0, %v2346
        %v2349 = vcosq.f32.pop %v2347
        %v2350 = vsinq.f32.pop %v2347
        %vm2351 = vweird.f32 %v587
        %v2352 = vadd.s32 %v2348, 3
        %v2353 = vand.u32 %v2352, 3
        %vm2354 = vcmp.lt.s32.totalorder %v2353, 2
        %vm2355 = vcmp.eq.s32.totalorder %v2353, 0
        %v2356 = vxor.u32 %v2350, 2147483648
        %v2357 = vsel %vm2355, %v2349, %v2356
        %vm2358 = vcmp.eq.s32.totalorder %v2353, 2
        %v2359 = vxor.u32 %v2349, 2147483648
        %v2360 = vsel %vm2358, %v2359, %v2350
        %v2361 = vsel %vm2354, %v2357, %v2360
        %v2362 = vsel %vm2351, nan, %v2361
        %v2363 = vand.u32 2147483647, %v588
        %vm2364 = vcmp.le.f32.partialorder %v2363, 0.7853982
        %vm2365 = vcmp.lt.s32.totalorder %v588, 0
        %v2366 = vand.u32 %v588, 2139095040
        %v2367 = vshrl.u32 %v2366, 23
        %v2368 = vsub.s32 %v2367, 127
        %v2369 = vand.u32 2147483647, %v588
        %v2370 = vand.u32 %v2369, 8388607
        %v2371 = vor.u32 %v2370, 8388608
        %v2372 = vsub.s32 0, %v2371
        %v2373 = vadd.s32 %v2368, 1
        %vm2374 = vcmp.gt.s32.totalorder %v2373, 0
        %v2375 = vsel %vm2374, %v2373, 0
        %v2376 = vshrl.u32 %v2375, 5
        %v2377 = vand.u32 %v2375, 31
        %v2378 = vsub.s32 32, %v2377
        %v2379 = vshrl.u32 683565275, %v2378
        %v2380 = vshll.u32 683565275, %v2377
        %v2381 = vshrl.u32 2475754826, %v2378
        %v2382 = vor.u32 %v2380, %v2381
        %v2383 = vshll.u32 2475754826, %v2377
        %v2384 = vshrl.u32 2131351028, %v2378
        %v2385 = vor.u32 %v2383, %v2384
        %v2386 = vshll.u32 2131351028, %v2377
        %v2387 = vshrl.u32 2102212464, %v2378
        %v2388 = vor.u32 %v2386, %v2387
        %v2389 = vshll.u32 2102212464, %v2377
        %v2390 = vshrl.u32 920167782, %v2378
        %v2391 = vor.u32 %v2389, %v2390
        %v2392 = vshll.u32 920167782, %v2377
        %v2393 = vshrl.u32 1326507024, %v2378
        %v2394 = vor.u32 %v2392, %v2393
        %vm2395 = vcmp.lt.s32.totalorder %v2376, 1
        %vm2396 = vcmp.lt.s32.totalorder %v2376, 2
        %vm2397 = vcmp.lt.s32.totalorder %v2376, 3
        %vm2398 = vcmp.lt.s32.totalorder %v2376, 4
        %v2399 = vsel %vm2395, %v2379, %v2382
        %v2400 = vsel %vm2398, %v2388, 2102212464
        %v2401 = vsel %vm2397, %v2385, %v2400
        %v2402 = vsel %vm2396, %v2399, %v2401
        %v2403 = vsel %vm2395, %v2382, %v2385
        %v2404 = vsel %vm2398, %v2391, 920167782
        %v2405 = vsel %vm2397, %v2388, %v2404
        %v2406 = vsel %vm2396, %v2403, %v2405
        %v2407 = vsel %vm2395, %v2385, %v2388
        %v2408 = vsel %vm2398, %v2394, 1326507024
        %v2409 = vsel %vm2397, %v2391, %v2408
        %v2410 = vsel %vm2396, %v2407, %v2409
        %v2411 = vshll.u32 %v2371, 8
        %v2412 = vmul.u32.u64.compose %v2411, %v2410
        %v2413 = vextract.low.u32 %v2412
        %v2414 = vextract.high.u32 %v2412
        %v2415 = vmul.u32.u64.compose %v2411, %v2406
        %v2416 = vextract.low.u32 %v2415
        %v2417 = vextract.high.u32 %v2415
        %v2418 = vmul.u32 %v2411, %v2402
        %v2419 = vadd.s32 %v2414, %v2416
        %vm2420 = vc.u32 %v2414, %v2416
        %v2421 = vadd.s32 %v2417, 1
        %v2422 = vsel %vm2420, %v2421, %v2417
        %v2423 = vadd.s32 %v2418, %v2422
        %v2424 = vadd.s32 %v2423, 536870912
        %v2425 = vshrl.u32 %v2424, 30
        %v2426 = vshll.u32 %v2425, 30
        %v2427 = vsub.s32 %v2423, %v2426
        %vm2428 = vcmp.lt.s32.totalorder %v2427, 0
        %v2429 = vsub.s32 0, %v2427
        %v2430 = vsel %vm2428, %v2429, %v2427
        %v2431 = vclz %v2430
        %v2432 = vsub.s32 %v2431, 2
        %vm2433 = vcmp.gt.s32.totalorder 0, %v2432
        %v2434 = vsel %vm2433, 0, %v2432
        %v2435 = vsub.s32 32, %v2434
        %v2436 = vshll.u32 %v2427, %v2434
        %v2437 = vshrl.u32 %v2419, %v2435
        %v2438 = vor.u32 %v2436, %v2437
        %v2439 = vsub.s32 4294967266, %v2434
        %v2440 = vadd.s32 %v2439, 127
        %v2441 = vshll.u32 %v2440, 23
        %v2442 = vor.u32 4788187, %v2441
        %v2443 = vand.u32 2147483647, %v2442
        %v2445 = vcvt.s32.f32 %v2438
        %v2446 = vmul.f32 %v2445, %v2443
        %v2447 = vxor.u32 %v2446, 2147483648
        %v2448 = vsel %vm2365, %v2447, %v2446
        %v2449 = vsub.s32 4, %v2425
        %v2450 = vsel %vm2365, %v2449, %v2425
        %v2451 = vsel %vm2364, %v588, %v2448
        %v2452 = vsel %vm2364, 0, %v2450
        %v2453 = vcosq.f32.pop %v2451
        %v2454 = vsinq.f32.pop %v2451
        %vm2455 = vweird.f32 %v588
        %v2456 = vadd.s32 %v2452, 3
        %v2457 = vand.u32 %v2456, 3
        %vm2458 = vcmp.lt.s32.totalorder %v2457, 2
        %vm2459 = vcmp.eq.s32.totalorder %v2457, 0
        %v2460 = vxor.u32 %v2454, 2147483648
        %v2461 = vsel %vm2459, %v2453, %v2460
        %vm2462 = vcmp.eq.s32.totalorder %v2457, 2
        %v2463 = vxor.u32 %v2453, 2147483648
        %v2464 = vsel %vm2462, %v2463, %v2454
        %v2465 = vsel %vm2458, %v2461, %v2464
        %v2466 = vsel %vm2455, nan, %v2465
        %v2467 = vand.u32 2147483647, %v589
        %vm2468 = vcmp.le.f32.partialorder %v2467, 0.7853982
        %vm2469 = vcmp.lt.s32.totalorder %v589, 0
        %v2470 = vand.u32 %v589, 2139095040
        %v2471 = vshrl.u32 %v2470, 23
        %v2472 = vsub.s32 %v2471, 127
        %v2473 = vand.u32 2147483647, %v589
        %v2474 = vand.u32 %v2473, 8388607
        %v2475 = vor.u32 %v2474, 8388608
        %v2476 = vsub.s32 0, %v2475
        %v2477 = vadd.s32 %v2472, 1
        %vm2478 = vcmp.gt.s32.totalorder %v2477, 0
        %v2479 = vsel %vm2478, %v2477, 0
        %v2480 = vshrl.u32 %v2479, 5
        %v2481 = vand.u32 %v2479, 31
        %v2482 = vsub.s32 32, %v2481
        %v2483 = vshrl.u32 683565275, %v2482
        %v2484 = vshll.u32 683565275, %v2481
        %v2485 = vshrl.u32 2475754826, %v2482
        %v2486 = vor.u32 %v2484, %v2485
        %v2487 = vshll.u32 2475754826, %v2481
        %v2488 = vshrl.u32 2131351028, %v2482
        %v2489 = vor.u32 %v2487, %v2488
        %v2490 = vshll.u32 2131351028, %v2481
        %v2491 = vshrl.u32 2102212464, %v2482
        %v2492 = vor.u32 %v2490, %v2491
        %v2493 = vshll.u32 2102212464, %v2481
        %v2494 = vshrl.u32 920167782, %v2482
        %v2495 = vor.u32 %v2493, %v2494
        %v2496 = vshll.u32 920167782, %v2481
        %v2497 = vshrl.u32 1326507024, %v2482
        %v2498 = vor.u32 %v2496, %v2497
        %vm2499 = vcmp.lt.s32.totalorder %v2480, 1
        %vm2500 = vcmp.lt.s32.totalorder %v2480, 2
        %vm2501 = vcmp.lt.s32.totalorder %v2480, 3
        %vm2502 = vcmp.lt.s32.totalorder %v2480, 4
        %v2503 = vsel %vm2499, %v2483, %v2486
        %v2504 = vsel %vm2502, %v2492, 2102212464
        %v2505 = vsel %vm2501, %v2489, %v2504
        %v2506 = vsel %vm2500, %v2503, %v2505
        %v2507 = vsel %vm2499, %v2486, %v2489
        %v2508 = vsel %vm2502, %v2495, 920167782
        %v2509 = vsel %vm2501, %v2492, %v2508
        %v2510 = vsel %vm2500, %v2507, %v2509
        %v2511 = vsel %vm2499, %v2489, %v2492
        %v2512 = vsel %vm2502, %v2498, 1326507024
        %v2513 = vsel %vm2501, %v2495, %v2512
        %v2514 = vsel %vm2500, %v2511, %v2513
        %v2515 = vshll.u32 %v2475, 8
        %v2516 = vmul.u32.u64.compose %v2515, %v2514
        %v2517 = vextract.low.u32 %v2516
        %v2518 = vextract.high.u32 %v2516
        %v2519 = vmul.u32.u64.compose %v2515, %v2510
        %v2520 = vextract.low.u32 %v2519
        %v2521 = vextract.high.u32 %v2519
        %v2522 = vmul.u32 %v2515, %v2506
        %v2523 = vadd.s32 %v2518, %v2520
        %vm2524 = vc.u32 %v2518, %v2520
        %v2525 = vadd.s32 %v2521, 1
        %v2526 = vsel %vm2524, %v2525, %v2521
        %v2527 = vadd.s32 %v2522, %v2526
        %v2528 = vadd.s32 %v2527, 536870912
        %v2529 = vshrl.u32 %v2528, 30
        %v2530 = vshll.u32 %v2529, 30
        %v2531 = vsub.s32 %v2527, %v2530
        %vm2532 = vcmp.lt.s32.totalorder %v2531, 0
        %v2533 = vsub.s32 0, %v2531
        %v2534 = vsel %vm2532, %v2533, %v2531
        %v2535 = vclz %v2534
        %v2536 = vsub.s32 %v2535, 2
        %vm2537 = vcmp.gt.s32.totalorder 0, %v2536
        %v2538 = vsel %vm2537, 0, %v2536
        %v2539 = vsub.s32 32, %v2538
        %v2540 = vshll.u32 %v2531, %v2538
        %v2541 = vshrl.u32 %v2523, %v2539
        %v2542 = vor.u32 %v2540, %v2541
        %v2543 = vsub.s32 4294967266, %v2538
        %v2544 = vadd.s32 %v2543, 127
        %v2545 = vshll.u32 %v2544, 23
        %v2546 = vor.u32 4788187, %v2545
        %v2547 = vand.u32 2147483647, %v2546
        %v2549 = vcvt.s32.f32 %v2542
        %v2550 = vmul.f32 %v2549, %v2547
        %v2551 = vxor.u32 %v2550, 2147483648
        %v2552 = vsel %vm2469, %v2551, %v2550
        %v2553 = vsub.s32 4, %v2529
        %v2554 = vsel %vm2469, %v2553, %v2529
        %v2555 = vsel %vm2468, %v589, %v2552
        %v2556 = vsel %vm2468, 0, %v2554
        %v2557 = vcosq.f32.pop %v2555
        %v2558 = vsinq.f32.pop %v2555
        %vm2559 = vweird.f32 %v589
        %v2560 = vadd.s32 %v2556, 3
        %v2561 = vand.u32 %v2560, 3
        %vm2562 = vcmp.lt.s32.totalorder %v2561, 2
        %vm2563 = vcmp.eq.s32.totalorder %v2561, 0
        %v2564 = vxor.u32 %v2558, 2147483648
        %v2565 = vsel %vm2563, %v2557, %v2564
        %vm2566 = vcmp.eq.s32.totalorder %v2561, 2
        %v2567 = vxor.u32 %v2557, 2147483648
        %v2568 = vsel %vm2566, %v2567, %v2558
        %v2569 = vsel %vm2562, %v2565, %v2568
        %v2570 = vsel %vm2559, nan, %v2569
        %v2571 = vand.u32 2147483647, %v590
        %vm2572 = vcmp.le.f32.partialorder %v2571, 0.7853982
        %vm2573 = vcmp.lt.s32.totalorder %v590, 0
        %v2574 = vand.u32 %v590, 2139095040
        %v2575 = vshrl.u32 %v2574, 23
        %v2576 = vsub.s32 %v2575, 127
        %v2577 = vand.u32 2147483647, %v590
        %v2578 = vand.u32 %v2577, 8388607
        %v2579 = vor.u32 %v2578, 8388608
        %v2580 = vsub.s32 0, %v2579
        %v2581 = vadd.s32 %v2576, 1
        %vm2582 = vcmp.gt.s32.totalorder %v2581, 0
        %v2583 = vsel %vm2582, %v2581, 0
        %v2584 = vshrl.u32 %v2583, 5
        %v2585 = vand.u32 %v2583, 31
        %v2586 = vsub.s32 32, %v2585
        %v2587 = vshrl.u32 683565275, %v2586
        %v2588 = vshll.u32 683565275, %v2585
        %v2589 = vshrl.u32 2475754826, %v2586
        %v2590 = vor.u32 %v2588, %v2589
        %v2591 = vshll.u32 2475754826, %v2585
        %v2592 = vshrl.u32 2131351028, %v2586
        %v2593 = vor.u32 %v2591, %v2592
        %v2594 = vshll.u32 2131351028, %v2585
        %v2595 = vshrl.u32 2102212464, %v2586
        %v2596 = vor.u32 %v2594, %v2595
        %v2597 = vshll.u32 2102212464, %v2585
        %v2598 = vshrl.u32 920167782, %v2586
        %v2599 = vor.u32 %v2597, %v2598
        %v2600 = vshll.u32 920167782, %v2585
        %v2601 = vshrl.u32 1326507024, %v2586
        %v2602 = vor.u32 %v2600, %v2601
        %vm2603 = vcmp.lt.s32.totalorder %v2584, 1
        %vm2604 = vcmp.lt.s32.totalorder %v2584, 2
        %vm2605 = vcmp.lt.s32.totalorder %v2584, 3
        %vm2606 = vcmp.lt.s32.totalorder %v2584, 4
        %v2607 = vsel %vm2603, %v2587, %v2590
        %v2608 = vsel %vm2606, %v2596, 2102212464
        %v2609 = vsel %vm2605, %v2593, %v2608
        %v2610 = vsel %vm2604, %v2607, %v2609
        %v2611 = vsel %vm2603, %v2590, %v2593
        %v2612 = vsel %vm2606, %v2599, 920167782
        %v2613 = vsel %vm2605, %v2596, %v2612
        %v2614 = vsel %vm2604, %v2611, %v2613
        %v2615 = vsel %vm2603, %v2593, %v2596
        %v2616 = vsel %vm2606, %v2602, 1326507024
        %v2617 = vsel %vm2605, %v2599, %v2616
        %v2618 = vsel %vm2604, %v2615, %v2617
        %v2619 = vshll.u32 %v2579, 8
        %v2620 = vmul.u32.u64.compose %v2619, %v2618
        %v2621 = vextract.low.u32 %v2620
        %v2622 = vextract.high.u32 %v2620
        %v2623 = vmul.u32.u64.compose %v2619, %v2614
        %v2624 = vextract.low.u32 %v2623
        %v2625 = vextract.high.u32 %v2623
        %v2626 = vmul.u32 %v2619, %v2610
        %v2627 = vadd.s32 %v2622, %v2624
        %vm2628 = vc.u32 %v2622, %v2624
        %v2629 = vadd.s32 %v2625, 1
        %v2630 = vsel %vm2628, %v2629, %v2625
        %v2631 = vadd.s32 %v2626, %v2630
        %v2632 = vadd.s32 %v2631, 536870912
        %v2633 = vshrl.u32 %v2632, 30
        %v2634 = vshll.u32 %v2633, 30
        %v2635 = vsub.s32 %v2631, %v2634
        %vm2636 = vcmp.lt.s32.totalorder %v2635, 0
        %v2637 = vsub.s32 0, %v2635
        %v2638 = vsel %vm2636, %v2637, %v2635
        %v2639 = vclz %v2638
        %v2640 = vsub.s32 %v2639, 2
        %vm2641 = vcmp.gt.s32.totalorder 0, %v2640
        %v2642 = vsel %vm2641, 0, %v2640
        %v2643 = vsub.s32 32, %v2642
        %v2644 = vshll.u32 %v2635, %v2642
        %v2645 = vshrl.u32 %v2627, %v2643
        %v2646 = vor.u32 %v2644, %v2645
        %v2647 = vsub.s32 4294967266, %v2642
        %v2648 = vadd.s32 %v2647, 127
        %v2649 = vshll.u32 %v2648, 23
        %v2650 = vor.u32 4788187, %v2649
        %v2651 = vand.u32 2147483647, %v2650
        %v2653 = vcvt.s32.f32 %v2646
        %v2654 = vmul.f32 %v2653, %v2651
        %v2655 = vxor.u32 %v2654, 2147483648
        %v2656 = vsel %vm2573, %v2655, %v2654
        %v2657 = vsub.s32 4, %v2633
        %v2658 = vsel %vm2573, %v2657, %v2633
        %v2659 = vsel %vm2572, %v590, %v2656
        %v2660 = vsel %vm2572, 0, %v2658
        %v2661 = vcosq.f32.pop %v2659
        %v2662 = vsinq.f32.pop %v2659
        %vm2663 = vweird.f32 %v590
        %v2664 = vadd.s32 %v2660, 3
        %v2665 = vand.u32 %v2664, 3
        %vm2666 = vcmp.lt.s32.totalorder %v2665, 2
        %vm2667 = vcmp.eq.s32.totalorder %v2665, 0
        %v2668 = vxor.u32 %v2662, 2147483648
        %v2669 = vsel %vm2667, %v2661, %v2668
        %vm2670 = vcmp.eq.s32.totalorder %v2665, 2
        %v2671 = vxor.u32 %v2661, 2147483648
        %v2672 = vsel %vm2670, %v2671, %v2662
        %v2673 = vsel %vm2666, %v2669, %v2672
        %v2674 = vsel %vm2663, nan, %v2673
        %v2675 = vand.u32 2147483647, %v591
        %vm2676 = vcmp.le.f32.partialorder %v2675, 0.7853982
        %vm2677 = vcmp.lt.s32.totalorder %v591, 0
        %v2678 = vand.u32 %v591, 2139095040
        %v2679 = vshrl.u32 %v2678, 23
        %v2680 = vsub.s32 %v2679, 127
        %v2681 = vand.u32 2147483647, %v591
        %v2682 = vand.u32 %v2681, 8388607
        %v2683 = vor.u32 %v2682, 8388608
        %v2684 = vsub.s32 0, %v2683
        %v2685 = vadd.s32 %v2680, 1
        %vm2686 = vcmp.gt.s32.totalorder %v2685, 0
        %v2687 = vsel %vm2686, %v2685, 0
        %v2688 = vshrl.u32 %v2687, 5
        %v2689 = vand.u32 %v2687, 31
        %v2690 = vsub.s32 32, %v2689
        %v2691 = vshrl.u32 683565275, %v2690
        %v2692 = vshll.u32 683565275, %v2689
        %v2693 = vshrl.u32 2475754826, %v2690
        %v2694 = vor.u32 %v2692, %v2693
        %v2695 = vshll.u32 2475754826, %v2689
        %v2696 = vshrl.u32 2131351028, %v2690
        %v2697 = vor.u32 %v2695, %v2696
        %v2698 = vshll.u32 2131351028, %v2689
        %v2699 = vshrl.u32 2102212464, %v2690
        %v2700 = vor.u32 %v2698, %v2699
        %v2701 = vshll.u32 2102212464, %v2689
        %v2702 = vshrl.u32 920167782, %v2690
        %v2703 = vor.u32 %v2701, %v2702
        %v2704 = vshll.u32 920167782, %v2689
        %v2705 = vshrl.u32 1326507024, %v2690
        %v2706 = vor.u32 %v2704, %v2705
        %vm2707 = vcmp.lt.s32.totalorder %v2688, 1
        %vm2708 = vcmp.lt.s32.totalorder %v2688, 2
        %vm2709 = vcmp.lt.s32.totalorder %v2688, 3
        %vm2710 = vcmp.lt.s32.totalorder %v2688, 4
        %v2711 = vsel %vm2707, %v2691, %v2694
        %v2712 = vsel %vm2710, %v2700, 2102212464
        %v2713 = vsel %vm2709, %v2697, %v2712
        %v2714 = vsel %vm2708, %v2711, %v2713
        %v2715 = vsel %vm2707, %v2694, %v2697
        %v2716 = vsel %vm2710, %v2703, 920167782
        %v2717 = vsel %vm2709, %v2700, %v2716
        %v2718 = vsel %vm2708, %v2715, %v2717
        %v2719 = vsel %vm2707, %v2697, %v2700
        %v2720 = vsel %vm2710, %v2706, 1326507024
        %v2721 = vsel %vm2709, %v2703, %v2720
        %v2722 = vsel %vm2708, %v2719, %v2721
        %v2723 = vshll.u32 %v2683, 8
        %v2724 = vmul.u32.u64.compose %v2723, %v2722
        %v2725 = vextract.low.u32 %v2724
        %v2726 = vextract.high.u32 %v2724
        %v2727 = vmul.u32.u64.compose %v2723, %v2718
        %v2728 = vextract.low.u32 %v2727
        %v2729 = vextract.high.u32 %v2727
        %v2730 = vmul.u32 %v2723, %v2714
        %v2731 = vadd.s32 %v2726, %v2728
        %vm2732 = vc.u32 %v2726, %v2728
        %v2733 = vadd.s32 %v2729, 1
        %v2734 = vsel %vm2732, %v2733, %v2729
        %v2735 = vadd.s32 %v2730, %v2734
        %v2736 = vadd.s32 %v2735, 536870912
        %v2737 = vshrl.u32 %v2736, 30
        %v2738 = vshll.u32 %v2737, 30
        %v2739 = vsub.s32 %v2735, %v2738
        %vm2740 = vcmp.lt.s32.totalorder %v2739, 0
        %v2741 = vsub.s32 0, %v2739
        %v2742 = vsel %vm2740, %v2741, %v2739
        %v2743 = vclz %v2742
        %v2744 = vsub.s32 %v2743, 2
        %vm2745 = vcmp.gt.s32.totalorder 0, %v2744
        %v2746 = vsel %vm2745, 0, %v2744
        %v2747 = vsub.s32 32, %v2746
        %v2748 = vshll.u32 %v2739, %v2746
        %v2749 = vshrl.u32 %v2731, %v2747
        %v2750 = vor.u32 %v2748, %v2749
        %v2751 = vsub.s32 4294967266, %v2746
        %v2752 = vadd.s32 %v2751, 127
        %v2753 = vshll.u32 %v2752, 23
        %v2754 = vor.u32 4788187, %v2753
        %v2755 = vand.u32 2147483647, %v2754
        %v2757 = vcvt.s32.f32 %v2750
        %v2758 = vmul.f32 %v2757, %v2755
        %v2759 = vxor.u32 %v2758, 2147483648
        %v2760 = vsel %vm2677, %v2759, %v2758
        %v2761 = vsub.s32 4, %v2737
        %v2762 = vsel %vm2677, %v2761, %v2737
        %v2763 = vsel %vm2676, %v591, %v2760
        %v2764 = vsel %vm2676, 0, %v2762
        %v2765 = vcosq.f32.pop %v2763
        %v2766 = vsinq.f32.pop %v2763
        %vm2767 = vweird.f32 %v591
        %v2768 = vadd.s32 %v2764, 3
        %v2769 = vand.u32 %v2768, 3
        %vm2770 = vcmp.lt.s32.totalorder %v2769, 2
        %vm2771 = vcmp.eq.s32.totalorder %v2769, 0
        %v2772 = vxor.u32 %v2766, 2147483648
        %v2773 = vsel %vm2771, %v2765, %v2772
        %vm2774 = vcmp.eq.s32.totalorder %v2769, 2
        %v2775 = vxor.u32 %v2765, 2147483648
        %v2776 = vsel %vm2774, %v2775, %v2766
        %v2777 = vsel %vm2770, %v2773, %v2776
        %v2778 = vsel %vm2767, nan, %v2777
        %v2779 = vand.u32 2147483647, %v592
        %vm2780 = vcmp.le.f32.partialorder %v2779, 0.7853982
        %vm2781 = vcmp.lt.s32.totalorder %v592, 0
        %v2782 = vand.u32 %v592, 2139095040
        %v2783 = vshrl.u32 %v2782, 23
        %v2784 = vsub.s32 %v2783, 127
        %v2785 = vand.u32 2147483647, %v592
        %v2786 = vand.u32 %v2785, 8388607
        %v2787 = vor.u32 %v2786, 8388608
        %v2788 = vsub.s32 0, %v2787
        %v2789 = vadd.s32 %v2784, 1
        %vm2790 = vcmp.gt.s32.totalorder %v2789, 0
        %v2791 = vsel %vm2790, %v2789, 0
        %v2792 = vshrl.u32 %v2791, 5
        %v2793 = vand.u32 %v2791, 31
        %v2794 = vsub.s32 32, %v2793
        %v2795 = vshrl.u32 683565275, %v2794
        %v2796 = vshll.u32 683565275, %v2793
        %v2797 = vshrl.u32 2475754826, %v2794
        %v2798 = vor.u32 %v2796, %v2797
        %v2799 = vshll.u32 2475754826, %v2793
        %v2800 = vshrl.u32 2131351028, %v2794
        %v2801 = vor.u32 %v2799, %v2800
        %v2802 = vshll.u32 2131351028, %v2793
        %v2803 = vshrl.u32 2102212464, %v2794
        %v2804 = vor.u32 %v2802, %v2803
        %v2805 = vshll.u32 2102212464, %v2793
        %v2806 = vshrl.u32 920167782, %v2794
        %v2807 = vor.u32 %v2805, %v2806
        %v2808 = vshll.u32 920167782, %v2793
        %v2809 = vshrl.u32 1326507024, %v2794
        %v2810 = vor.u32 %v2808, %v2809
        %vm2811 = vcmp.lt.s32.totalorder %v2792, 1
        %vm2812 = vcmp.lt.s32.totalorder %v2792, 2
        %vm2813 = vcmp.lt.s32.totalorder %v2792, 3
        %vm2814 = vcmp.lt.s32.totalorder %v2792, 4
        %v2815 = vsel %vm2811, %v2795, %v2798
        %v2816 = vsel %vm2814, %v2804, 2102212464
        %v2817 = vsel %vm2813, %v2801, %v2816
        %v2818 = vsel %vm2812, %v2815, %v2817
        %v2819 = vsel %vm2811, %v2798, %v2801
        %v2820 = vsel %vm2814, %v2807, 920167782
        %v2821 = vsel %vm2813, %v2804, %v2820
        %v2822 = vsel %vm2812, %v2819, %v2821
        %v2823 = vsel %vm2811, %v2801, %v2804
        %v2824 = vsel %vm2814, %v2810, 1326507024
        %v2825 = vsel %vm2813, %v2807, %v2824
        %v2826 = vsel %vm2812, %v2823, %v2825
        %v2827 = vshll.u32 %v2787, 8
        %v2828 = vmul.u32.u64.compose %v2827, %v2826
        %v2829 = vextract.low.u32 %v2828
        %v2830 = vextract.high.u32 %v2828
        %v2831 = vmul.u32.u64.compose %v2827, %v2822
        %v2832 = vextract.low.u32 %v2831
        %v2833 = vextract.high.u32 %v2831
        %v2834 = vmul.u32 %v2827, %v2818
        %v2835 = vadd.s32 %v2830, %v2832
        %vm2836 = vc.u32 %v2830, %v2832
        %v2837 = vadd.s32 %v2833, 1
        %v2838 = vsel %vm2836, %v2837, %v2833
        %v2839 = vadd.s32 %v2834, %v2838
        %v2840 = vadd.s32 %v2839, 536870912
        %v2841 = vshrl.u32 %v2840, 30
        %v2842 = vshll.u32 %v2841, 30
        %v2843 = vsub.s32 %v2839, %v2842
        %vm2844 = vcmp.lt.s32.totalorder %v2843, 0
        %v2845 = vsub.s32 0, %v2843
        %v2846 = vsel %vm2844, %v2845, %v2843
        %v2847 = vclz %v2846
        %v2848 = vsub.s32 %v2847, 2
        %vm2849 = vcmp.gt.s32.totalorder 0, %v2848
        %v2850 = vsel %vm2849, 0, %v2848
        %v2851 = vsub.s32 32, %v2850
        %v2852 = vshll.u32 %v2843, %v2850
        %v2853 = vshrl.u32 %v2835, %v2851
        %v2854 = vor.u32 %v2852, %v2853
        %v2855 = vsub.s32 4294967266, %v2850
        %v2856 = vadd.s32 %v2855, 127
        %v2857 = vshll.u32 %v2856, 23
        %v2858 = vor.u32 4788187, %v2857
        %v2859 = vand.u32 2147483647, %v2858
        %v2861 = vcvt.s32.f32 %v2854
        %v2862 = vmul.f32 %v2861, %v2859
        %v2863 = vxor.u32 %v2862, 2147483648
        %v2864 = vsel %vm2781, %v2863, %v2862
        %v2865 = vsub.s32 4, %v2841
        %v2866 = vsel %vm2781, %v2865, %v2841
        %v2867 = vsel %vm2780, %v592, %v2864
        %v2868 = vsel %vm2780, 0, %v2866
        %v2869 = vcosq.f32.pop %v2867
        %v2870 = vsinq.f32.pop %v2867
        %vm2871 = vweird.f32 %v592
        %v2872 = vadd.s32 %v2868, 3
        %v2873 = vand.u32 %v2872, 3
        %vm2874 = vcmp.lt.s32.totalorder %v2873, 2
        %vm2875 = vcmp.eq.s32.totalorder %v2873, 0
        %v2876 = vxor.u32 %v2870, 2147483648
        %v2877 = vsel %vm2875, %v2869, %v2876
        %vm2878 = vcmp.eq.s32.totalorder %v2873, 2
        %v2879 = vxor.u32 %v2869, 2147483648
        %v2880 = vsel %vm2878, %v2879, %v2870
        %v2881 = vsel %vm2874, %v2877, %v2880
        %v2882 = vsel %vm2871, nan, %v2881
        %v2883 = vand.u32 2147483647, %v593
        %vm2884 = vcmp.le.f32.partialorder %v2883, 0.7853982
        %vm2885 = vcmp.lt.s32.totalorder %v593, 0
        %v2886 = vand.u32 %v593, 2139095040
        %v2887 = vshrl.u32 %v2886, 23
        %v2888 = vsub.s32 %v2887, 127
        %v2889 = vand.u32 2147483647, %v593
        %v2890 = vand.u32 %v2889, 8388607
        %v2891 = vor.u32 %v2890, 8388608
        %v2892 = vsub.s32 0, %v2891
        %v2893 = vadd.s32 %v2888, 1
        %vm2894 = vcmp.gt.s32.totalorder %v2893, 0
        %v2895 = vsel %vm2894, %v2893, 0
        %v2896 = vshrl.u32 %v2895, 5
        %v2897 = vand.u32 %v2895, 31
        %v2898 = vsub.s32 32, %v2897
        %v2899 = vshrl.u32 683565275, %v2898
        %v2900 = vshll.u32 683565275, %v2897
        %v2901 = vshrl.u32 2475754826, %v2898
        %v2902 = vor.u32 %v2900, %v2901
        %v2903 = vshll.u32 2475754826, %v2897
        %v2904 = vshrl.u32 2131351028, %v2898
        %v2905 = vor.u32 %v2903, %v2904
        %v2906 = vshll.u32 2131351028, %v2897
        %v2907 = vshrl.u32 2102212464, %v2898
        %v2908 = vor.u32 %v2906, %v2907
        %v2909 = vshll.u32 2102212464, %v2897
        %v2910 = vshrl.u32 920167782, %v2898
        %v2911 = vor.u32 %v2909, %v2910
        %v2912 = vshll.u32 920167782, %v2897
        %v2913 = vshrl.u32 1326507024, %v2898
        %v2914 = vor.u32 %v2912, %v2913
        %vm2915 = vcmp.lt.s32.totalorder %v2896, 1
        %vm2916 = vcmp.lt.s32.totalorder %v2896, 2
        %vm2917 = vcmp.lt.s32.totalorder %v2896, 3
        %vm2918 = vcmp.lt.s32.totalorder %v2896, 4
        %v2919 = vsel %vm2915, %v2899, %v2902
        %v2920 = vsel %vm2918, %v2908, 2102212464
        %v2921 = vsel %vm2917, %v2905, %v2920
        %v2922 = vsel %vm2916, %v2919, %v2921
        %v2923 = vsel %vm2915, %v2902, %v2905
        %v2924 = vsel %vm2918, %v2911, 920167782
        %v2925 = vsel %vm2917, %v2908, %v2924
        %v2926 = vsel %vm2916, %v2923, %v2925
        %v2927 = vsel %vm2915, %v2905, %v2908
        %v2928 = vsel %vm2918, %v2914, 1326507024
        %v2929 = vsel %vm2917, %v2911, %v2928
        %v2930 = vsel %vm2916, %v2927, %v2929
        %v2931 = vshll.u32 %v2891, 8
        %v2932 = vmul.u32.u64.compose %v2931, %v2930
        %v2933 = vextract.low.u32 %v2932
        %v2934 = vextract.high.u32 %v2932
        %v2935 = vmul.u32.u64.compose %v2931, %v2926
        %v2936 = vextract.low.u32 %v2935
        %v2937 = vextract.high.u32 %v2935
        %v2938 = vmul.u32 %v2931, %v2922
        %v2939 = vadd.s32 %v2934, %v2936
        %vm2940 = vc.u32 %v2934, %v2936
        %v2941 = vadd.s32 %v2937, 1
        %v2942 = vsel %vm2940, %v2941, %v2937
        %v2943 = vadd.s32 %v2938, %v2942
        %v2944 = vadd.s32 %v2943, 536870912
        %v2945 = vshrl.u32 %v2944, 30
        %v2946 = vshll.u32 %v2945, 30
        %v2947 = vsub.s32 %v2943, %v2946
        %vm2948 = vcmp.lt.s32.totalorder %v2947, 0
        %v2949 = vsub.s32 0, %v2947
        %v2950 = vsel %vm2948, %v2949, %v2947
        %v2951 = vclz %v2950
        %v2952 = vsub.s32 %v2951, 2
        %vm2953 = vcmp.gt.s32.totalorder 0, %v2952
        %v2954 = vsel %vm2953, 0, %v2952
        %v2955 = vsub.s32 32, %v2954
        %v2956 = vshll.u32 %v2947, %v2954
        %v2957 = vshrl.u32 %v2939, %v2955
        %v2958 = vor.u32 %v2956, %v2957
        %v2959 = vsub.s32 4294967266, %v2954
        %v2960 = vadd.s32 %v2959, 127
        %v2961 = vshll.u32 %v2960, 23
        %v2962 = vor.u32 4788187, %v2961
        %v2963 = vand.u32 2147483647, %v2962
        %v2965 = vcvt.s32.f32 %v2958
        %v2966 = vmul.f32 %v2965, %v2963
        %v2967 = vxor.u32 %v2966, 2147483648
        %v2968 = vsel %vm2885, %v2967, %v2966
        %v2969 = vsub.s32 4, %v2945
        %v2970 = vsel %vm2885, %v2969, %v2945
        %v2971 = vsel %vm2884, %v593, %v2968
        %v2972 = vsel %vm2884, 0, %v2970
        %v2973 = vcosq.f32.pop %v2971
        %v2974 = vsinq.f32.pop %v2971
        %vm2975 = vweird.f32 %v593
        %v2976 = vadd.s32 %v2972, 3
        %v2977 = vand.u32 %v2976, 3
        %vm2978 = vcmp.lt.s32.totalorder %v2977, 2
        %vm2979 = vcmp.eq.s32.totalorder %v2977, 0
        %v2980 = vxor.u32 %v2974, 2147483648
        %v2981 = vsel %vm2979, %v2973, %v2980
        %vm2982 = vcmp.eq.s32.totalorder %v2977, 2
        %v2983 = vxor.u32 %v2973, 2147483648
        %v2984 = vsel %vm2982, %v2983, %v2974
        %v2985 = vsel %vm2978, %v2981, %v2984
        %v2986 = vsel %vm2975, nan, %v2985
        %v2987 = vand.u32 2147483647, %v594
        %vm2988 = vcmp.le.f32.partialorder %v2987, 0.7853982
        %vm2989 = vcmp.lt.s32.totalorder %v594, 0
        %v2990 = vand.u32 %v594, 2139095040
        %v2991 = vshrl.u32 %v2990, 23
        %v2992 = vsub.s32 %v2991, 127
        %v2993 = vand.u32 2147483647, %v594
        %v2994 = vand.u32 %v2993, 8388607
        %v2995 = vor.u32 %v2994, 8388608
        %v2996 = vsub.s32 0, %v2995
        %v2997 = vadd.s32 %v2992, 1
        %vm2998 = vcmp.gt.s32.totalorder %v2997, 0
        %v2999 = vsel %vm2998, %v2997, 0
        %v3000 = vshrl.u32 %v2999, 5
        %v3001 = vand.u32 %v2999, 31
        %v3002 = vsub.s32 32, %v3001
        %v3003 = vshrl.u32 683565275, %v3002
        %v3004 = vshll.u32 683565275, %v3001
        %v3005 = vshrl.u32 2475754826, %v3002
        %v3006 = vor.u32 %v3004, %v3005
        %v3007 = vshll.u32 2475754826, %v3001
        %v3008 = vshrl.u32 2131351028, %v3002
        %v3009 = vor.u32 %v3007, %v3008
        %v3010 = vshll.u32 2131351028, %v3001
        %v3011 = vshrl.u32 2102212464, %v3002
        %v3012 = vor.u32 %v3010, %v3011
        %v3013 = vshll.u32 2102212464, %v3001
        %v3014 = vshrl.u32 920167782, %v3002
        %v3015 = vor.u32 %v3013, %v3014
        %v3016 = vshll.u32 920167782, %v3001
        %v3017 = vshrl.u32 1326507024, %v3002
        %v3018 = vor.u32 %v3016, %v3017
        %vm3019 = vcmp.lt.s32.totalorder %v3000, 1
        %vm3020 = vcmp.lt.s32.totalorder %v3000, 2
        %vm3021 = vcmp.lt.s32.totalorder %v3000, 3
        %vm3022 = vcmp.lt.s32.totalorder %v3000, 4
        %v3023 = vsel %vm3019, %v3003, %v3006
        %v3024 = vsel %vm3022, %v3012, 2102212464
        %v3025 = vsel %vm3021, %v3009, %v3024
        %v3026 = vsel %vm3020, %v3023, %v3025
        %v3027 = vsel %vm3019, %v3006, %v3009
        %v3028 = vsel %vm3022, %v3015, 920167782
        %v3029 = vsel %vm3021, %v3012, %v3028
        %v3030 = vsel %vm3020, %v3027, %v3029
        %v3031 = vsel %vm3019, %v3009, %v3012
        %v3032 = vsel %vm3022, %v3018, 1326507024
        %v3033 = vsel %vm3021, %v3015, %v3032
        %v3034 = vsel %vm3020, %v3031, %v3033
        %v3035 = vshll.u32 %v2995, 8
        %v3036 = vmul.u32.u64.compose %v3035, %v3034
        %v3037 = vextract.low.u32 %v3036
        %v3038 = vextract.high.u32 %v3036
        %v3039 = vmul.u32.u64.compose %v3035, %v3030
        %v3040 = vextract.low.u32 %v3039
        %v3041 = vextract.high.u32 %v3039
        %v3042 = vmul.u32 %v3035, %v3026
        %v3043 = vadd.s32 %v3038, %v3040
        %vm3044 = vc.u32 %v3038, %v3040
        %v3045 = vadd.s32 %v3041, 1
        %v3046 = vsel %vm3044, %v3045, %v3041
        %v3047 = vadd.s32 %v3042, %v3046
        %v3048 = vadd.s32 %v3047, 536870912
        %v3049 = vshrl.u32 %v3048, 30
        %v3050 = vshll.u32 %v3049, 30
        %v3051 = vsub.s32 %v3047, %v3050
        %vm3052 = vcmp.lt.s32.totalorder %v3051, 0
        %v3053 = vsub.s32 0, %v3051
        %v3054 = vsel %vm3052, %v3053, %v3051
        %v3055 = vclz %v3054
        %v3056 = vsub.s32 %v3055, 2
        %vm3057 = vcmp.gt.s32.totalorder 0, %v3056
        %v3058 = vsel %vm3057, 0, %v3056
        %v3059 = vsub.s32 32, %v3058
        %v3060 = vshll.u32 %v3051, %v3058
        %v3061 = vshrl.u32 %v3043, %v3059
        %v3062 = vor.u32 %v3060, %v3061
        %v3063 = vsub.s32 4294967266, %v3058
        %v3064 = vadd.s32 %v3063, 127
        %v3065 = vshll.u32 %v3064, 23
        %v3066 = vor.u32 4788187, %v3065
        %v3067 = vand.u32 2147483647, %v3066
        %v3069 = vcvt.s32.f32 %v3062
        %v3070 = vmul.f32 %v3069, %v3067
        %v3071 = vxor.u32 %v3070, 2147483648
        %v3072 = vsel %vm2989, %v3071, %v3070
        %v3073 = vsub.s32 4, %v3049
        %v3074 = vsel %vm2989, %v3073, %v3049
        %v3075 = vsel %vm2988, %v594, %v3072
        %v3076 = vsel %vm2988, 0, %v3074
        %v3077 = vcosq.f32.pop %v3075
        %v3078 = vsinq.f32.pop %v3075
        %vm3079 = vweird.f32 %v594
        %v3080 = vadd.s32 %v3076, 3
        %v3081 = vand.u32 %v3080, 3
        %vm3082 = vcmp.lt.s32.totalorder %v3081, 2
        %vm3083 = vcmp.eq.s32.totalorder %v3081, 0
        %v3084 = vxor.u32 %v3078, 2147483648
        %v3085 = vsel %vm3083, %v3077, %v3084
        %vm3086 = vcmp.eq.s32.totalorder %v3081, 2
        %v3087 = vxor.u32 %v3077, 2147483648
        %v3088 = vsel %vm3086, %v3087, %v3078
        %v3089 = vsel %vm3082, %v3085, %v3088
        %v3090 = vsel %vm3079, nan, %v3089
        %3091 = vst [vmem:[%s161] sm:$0xff] %v698
        %3092 = vst [vmem:[%s161 + $0x8] sm:$0xff] %v802
        %3093 = vst [vmem:[%s161 + $0x10] sm:$0xff] %v906
        %3094 = vst [vmem:[%s161 + $0x18] sm:$0xff] %v1010
        %3095 = vst [vmem:[%s161 + $0x20] sm:$0xff] %v1114
        %3096 = vst [vmem:[%s161 + $0x28] sm:$0xff] %v1218
        %3097 = vst [vmem:[%s161 + $0x30] sm:$0xff] %v1322
        %3098 = vst [vmem:[%s161 + $0x38] sm:$0xff] %v1426
        %3099 = vst [vmem:[%s161 + $0x40] sm:$0xff] %v1530
        %3100 = vst [vmem:[%s161 + $0x48] sm:$0xff] %v1634
        %3101 = vst [vmem:[%s161 + $0x50] sm:$0xff] %v1738
        %3102 = vst [vmem:[%s161 + $0x58] sm:$0xff] %v1842
        %3103 = vst [vmem:[%s161 + $0x60] sm:$0xff] %v1946
        %3104 = vst [vmem:[%s161 + $0x68] sm:$0xff] %v2050
        %3105 = vst [vmem:[%s161 + $0x70] sm:$0xff] %v2154
        %3106 = vst [vmem:[%s161 + $0x78] sm:$0xff] %v2258
        %3107 = vst [vmem:[%s161 + $0x80] sm:$0xff] %v2362
        %3108 = vst [vmem:[%s161 + $0x88] sm:$0xff] %v2466
        %3109 = vst [vmem:[%s161 + $0x90] sm:$0xff] %v2570
        %3110 = vst [vmem:[%s161 + $0x98] sm:$0xff] %v2674
        %3111 = vst [vmem:[%s161 + $0xa0] sm:$0xff] %v2778
        %3112 = vst [vmem:[%s161 + $0xa8] sm:$0xff] %v2882
        %3113 = vst [vmem:[%s161 + $0xb0] sm:$0xff] %v2986
        %3114 = vst [vmem:[%s161 + $0xb8] sm:$0xff] %v3090
        %s3115 = sand.u32 %s87, 1
        %s3116 = scalar_lea.sflag [#allocation3], %s3115
        %s3117 = sand.u32 %s87, 1
        %s3118 = smul.addr %s3117, 192
        %s3119 = scalar_lea.vmem [#allocation2], %s3118
        // Predicated region
        $region29: #{tpu_custom_call.1} parent=27 // pred_check
          %p3120 = pneg %p97
        $region30: #{tpu_custom_call.1} parent=27 // pred_check_branch
          %3122 = sbr.rel (%p3120) target = $region32
        $region31: #{tpu_custom_call.1} parent=27 // pred_region
          %s3123 = smul.u32 8, %s21
          %s3125 = ssub.s32 3072, 3072
          %3126 = vsyncadd %s3116, %s3125
          %s3127 = smul.addr %s20, 48
          %s3128 = sadd.s32 %s3123, %s3127
          %s3129 = smul.addr %s3128, 128
          %s3130 = scalar_lea.hbm %s2, %s3129
          %s3131 = sshll.u32 %s3119, 4
          %s3132 = int_to_ptr.vmem [resolvable:$true] %s3131
          %3137 = dma.vmem_to_hbm [thread:$0]  %s3132, 3072, %s3130, %s3116, 1024, 2048, 64
        $region32: #{tpu_custom_call.1} parent=27 // pred_fallthru
          _
      $region28: #{tpu_custom_call.1} parent=5 // pred_fallthru
        _
      %p3138 = scmp.le.s32.totalorder 2, %s11
      // Predicated region
      $region33: #{tpu_custom_call.1} parent=5 // pred_check
        %p3139 = pneg %p3138
      $region34: #{tpu_custom_call.1} parent=5 // pred_check_branch
        %3141 = sbr.rel (%p3139) target = $region36
      $region35: #{tpu_custom_call.1} parent=5 // pred_region
        %s3142 = ssub.s32 %s11, 2
        // Predicated region
        $region37: #{tpu_custom_call.1} parent=35 // pred_check
          %p3143 = pneg %p103
        $region38: #{tpu_custom_call.1} parent=35 // pred_check_branch
          %3145 = sbr.rel (%p3143) target = $region40
        $region39: #{tpu_custom_call.1} parent=35 // pred_region
          %s3146 = sand.u32 %s88, 1
          %s3147 = scalar_lea.sflag [#allocation3], %s3146
          %s3148 = sand.u32 %s88, 1
          %s3149 = smul.addr %s3148, 192
          %s3150 = scalar_lea.vmem [#allocation2], %s3149
          %3151 = dma.done %s3147, 3072
        $region40: #{tpu_custom_call.1} parent=35 // pred_fallthru
          _
      $region36: #{tpu_custom_call.1} parent=5 // pred_fallthru
        _
    $region6: #{tpu_custom_call.1} parent=1 // loop_footer
      %s15 = sadd.s32 1, %s11
    $region7: #{tpu_custom_call.1} parent=1 // loop_footer_branch
      %10 = sbr.rel target = $region3
    $region8: #{tpu_custom_call.1} parent=1 // loop_exit
      _
    %3152 = vsyncpa [#allocation3], 1
    %s3153 = scalar_lea.sflag [#allocation3], 1
    %3154 = vsyncpa %s3153, 1

</llo_original>
